<compile_context>
chip_gen: v7x
topology: tpu7x:2x2x1
jax: 0.10.0
libtpu: 0.0.40
codegen_flags: <defaults>
</compile_context>

<pallas_src>
import functools

import jax
import jax.numpy as jnp
from jax.experimental import pallas as pl
from jax.experimental.pallas import tpu as pltpu


def sequential_fwd_kernel(x_ref, t_ref, p_ref, o_ref):
    # Param slab layout (H+2, H+4):
    #   rows 0:H   -> cols [0:H]=W2, [H]=W1[:,0], [H+1]=W1[:,1], [H+2]=b1, [H+3]=b2
    #   rows H:H+2 -> cols [0:H]=W3, [H]=b3
    hdim = p_ref.shape[0] - 2
    x = x_ref[...]                                # (2, T) columns = samples
    p = p_ref[...]                                # (H+2, H+4)

    w2 = p[0:hdim, 0:hdim]                        # (H, H)
    w1c0 = p[0:hdim, hdim:hdim + 1]               # (H, 1)
    w1c1 = p[0:hdim, hdim + 1:hdim + 2]           # (H, 1)
    b1 = p[0:hdim, hdim + 2:hdim + 3]             # (H, 1)
    b2 = p[0:hdim, hdim + 3:hdim + 4]             # (H, 1)
    w3 = p[hdim:hdim + 2, 0:hdim]                 # (2, H)
    b3 = p[hdim:hdim + 2, hdim:hdim + 1]          # (2, 1)

    # Linear(2 -> H) + ReLU: K=2 contraction done as f32 VPU broadcast-FMAs
    # (a 2-deep contraction would waste an entire MXU pass).
    h1 = jnp.maximum(w1c0 * x[0:1, :] + w1c1 * x[1:2, :] + b1, 0.0)      # (H, T)

    # Linear(H -> H) + ReLU: bf16 MXU operands, f32 accumulation
    # (~3x MXU throughput vs multi-pass f32 inputs on all generations).
    h2 = jnp.maximum(
        jnp.dot(w2.astype(jnp.bfloat16), h1.astype(jnp.bfloat16),
                preferred_element_type=jnp.float32) + b2, 0.0)           # (H, T)

    # Linear(H -> 2): real H-deep contraction, bf16 operands on the MXU.
    out = jnp.dot(w3.astype(jnp.bfloat16), h2.astype(jnp.bfloat16),
                  preferred_element_type=jnp.float32) + b3               # (2, T)

    # argmax over the 2 classes; strict '>' reproduces torch.argmax's
    # first-index tie-break (ties -> class 0). Stored as float32.
    pred = jnp.where(out[1:2, :] > out[0:1, :], 1.0, 0.0)                # (1, T)

    # Per-sample MSE partial: mean over the 2 outputs (sublane slice-add,
    # no cross-lane reduce). Summed over the batch in the wrapper.
    diff = out - t_ref[...]                                              # (2, T)
    d2 = diff * diff
    sq = (d2[0:1, :] + d2[1:2, :]) * 0.5                                 # (1, T)

    # Single unmasked full 8-sublane, 128-lane-dense store (no vst.msk).
    tlen = out.shape[1]
    slab = jnp.concatenate(
        [out, pred, sq, jnp.zeros((4, tlen), jnp.float32)], axis=0)      # (8, T)
    o_ref[...] = slab


def _pack_params(params):
    """Merge the 6 parameter tensors into one VMEM slab (1 DMA descriptor)."""
    w1, b1, w2, b2, w3, b3 = params
    top = jnp.concatenate([w2, w1, b1, b2], axis=1)                          # (H, H+4)
    bot = jnp.concatenate([w3, b3, jnp.zeros((2, 3), jnp.float32)], axis=1)  # (2, H+4)
    return jnp.concatenate([top, bot], axis=0)                               # (H+2, H+4)


def _default_grid_steps():
    """2 parallel grid steps on v7x (2 TensorCores/chip), 1 whole-batch step elsewhere."""
    try:
        kind = jax.devices()[0].device_kind.lower()
    except Exception:
        return 1
    return 2 if "v7" in kind else 1


def sequential_forward(x, target, params, *, grid_steps=None):
    """x: (N, 2) float32 (sample per row, as the module indexes input[i]);
    target: (2, N) float32 (module convention).
    Returns (x_last (2,1), predicted (N,), loss scalar, out_cols (2,N))."""
    if grid_steps is None:
        grid_steps = _default_grid_steps()
    n = x.shape[0]
    h = params[0].shape[0]

    # Pad so tile_n = n_pad // grid_steps is a multiple of 128 lanes.
    quantum = 128 * grid_steps
    n_pad = quantum * pl.cdiv(n, quantum)
    tile_n = n_pad // grid_steps

    # One cheap relayout of the tiny (N,2) input into the module's internal
    # column layout; `target` is used in its native (2,N) layout — no
    # per-target transpose glue, and no in-kernel relayouts at all.
    x_cols = jnp.transpose(x)                                  # (2, N)
    if n_pad != n:
        x_cols = jnp.pad(x_cols, ((0, 0), (0, n_pad - n)))
        target = jnp.pad(target, ((0, 0), (0, n_pad - n)))
    pslab = _pack_params(params)

    # Advisory cost: 2 MLP layers of matmul + K=2 FMA layer; f32 I/O bytes.
    flops = 2 * n_pad * (2 * h + h * h + 2 * h)
    bytes_accessed = n_pad * (2 + 2 + 8) * 4 + (h + 2) * (h + 4) * 4
    cost = pl.CostEstimate(flops=flops, transcendentals=0,
                           bytes_accessed=bytes_accessed)

    grid = (grid_steps,)
    out_slab = pl.pallas_call(
        sequential_fwd_kernel,
        out_shape=jax.ShapeDtypeStruct((8, n_pad), jnp.float32),
        grid=grid,
        in_specs=[
            pl.BlockSpec((2, tile_n), lambda i: (0, i)),           # x columns
            pl.BlockSpec((2, tile_n), lambda i: (0, i)),           # target columns
            pl.BlockSpec((h + 2, h + 4), lambda i: (0, 0)),        # params, VMEM-resident
        ],
        out_specs=pl.BlockSpec((8, tile_n), lambda i: (0, i)),     # packed lane-dense slab
        compiler_params=pltpu.CompilerParams(
            dimension_semantics=("parallel",)),
        cost_estimate=cost,
    )(x_cols, target, pslab)

    out_cols = out_slab[0:2, :n]          # (2, N): column i = sample i's final activation x
    predicted = out_slab[2, :n]           # (N,) float32, like the torch.empty(...) buffer
    loss = jnp.sum(out_slab[3, :n])       # self.loss accumulated over the batch
    x_last = out_cols[:, n - 1:n]         # forward() returns the last sample's x, shape (2,1)
    return x_last, predicted, loss, out_cols


def init_params(key, hidden=32):
    k1, k2, k3, k4, k5, k6 = jax.random.split(key, 6)
    # PyTorch Linear convention: W is (out_features, in_features), bias a column,
    # so each layer computes W @ x_col + b exactly like the per-sample module.
    w1 = jax.random.normal(k1, (hidden, 2), jnp.float32) * 0.5
    b1 = jax.random.normal(k4, (hidden, 1), jnp.float32) * 0.1
    w2 = jax.random.normal(k2, (hidden, hidden), jnp.float32) * 0.2
    b2 = jax.random.normal(k5, (hidden, 1), jnp.float32) * 0.1
    w3 = jax.random.normal(k3, (2, hidden), jnp.float32) * 0.2
    b3 = jax.random.normal(k6, (2, 1), jnp.float32) * 0.1
    return (w1, b1, w2, b2, w3, b3)


if __name__ == "__main__":
    # TODO(synk): backward()/SGD step()/zero_grad()/plotting/save-load are
    # training & I/O machinery with no forward-pass Pallas equivalent; only the
    # forward pass (MLP + argmax prediction + accumulated MSE loss) is implemented.
    key = jax.random.PRNGKey(0)
    kx, kt, kp = jax.random.split(key, 3)

    # Thousands of samples per call to amortize launch/DMA overhead; data stays
    # tiny (2048 x 2 f32). Hidden size matches the module's canonical usage.
    N, HIDDEN = 2048, 32
    x_train = jax.random.normal(kx, (N, 2), jnp.float32)
    labels = jax.random.bernoulli(kt, 0.5, (N,)).astype(jnp.float32)
    target = jnp.stack([1.0 - labels, labels], axis=0)          # (2, N), module convention

    params = init_params(kp, HIDDEN)

    grid_steps = _default_grid_steps()                          # 1 (v5e/v6e) or 2 (v7x)
    fwd = jax.jit(functools.partial(sequential_forward, grid_steps=grid_steps))
    x_last, predicted, loss, out_cols = fwd(x_train, target, params)
    jax.block_until_ready((x_last, predicted, loss, out_cols))

    # sanity check against a plain-JAX f32 reference of the same forward pass
    # (tolerances loosened for the bf16 MXU operands; accumulation stays f32).
    w1, b1, w2, b2, w3, b3 = params
    ref_h = jnp.maximum(x_train @ w1.T + b1.T, 0.0)
    ref_h = jnp.maximum(ref_h @ w2.T + b2.T, 0.0)
    ref_out = ref_h @ w3.T + b3.T                               # (N, 2)
    ref_loss = jnp.sum(jnp.mean((ref_out - target.T) ** 2, axis=1))

    assert jnp.allclose(out_cols.T, ref_out, rtol=5e-2, atol=5e-2)
    assert jnp.allclose(loss, ref_loss, rtol=5e-2, atol=5e-1)
    # argmax semantics (ties -> class 0, torch.argmax-compatible), checked
    # against the kernel's own outputs so bf16/MXU rounding can't flip a class
    # relative to what the kernel itself computed.
    assert jnp.array_equal(predicted, jnp.argmax(out_cols, axis=0).astype(jnp.float32))
    assert x_last.shape == (2, 1)

    print("KERNEL_OK")
</pallas_src>

<mosaic_0001>
module attributes {stable_mosaic.version = 11 : i64} {
  func.func @sequential_fwd_kernel(%arg0: i32, %arg1: memref<2x2048xf32, #tpu.memory_space<vmem>>, %arg2: memref<2x2048xf32, #tpu.memory_space<vmem>>, %arg3: memref<34x36xf32, #tpu.memory_space<vmem>>, %arg4: memref<8x2048xf32, #tpu.memory_space<vmem>>) attributes {dimension_semantics = [#tpu.dimension_semantics<parallel>], iteration_bounds = array<i64: 1>, scalar_prefetch = 0 : i64, scratch_operands = 0 : i64, tpu.core_type = #tpu.core_type<tc>, window_params = [{transform_indices = @transform_0, window_bounds = array<i64: 2, 2048>}, {transform_indices = @transform_1, window_bounds = array<i64: 2, 2048>}, {pipeline_mode = #tpu.pipeline_mode<synchronous>, transform_indices = @transform_2, window_bounds = array<i64: 34, 36>}, {transform_indices = @transform_3, window_bounds = array<i64: 8, 2048>}]} {
    %c0 = arith.constant 0 : index
    %c0_0 = arith.constant 0 : index
    %0 = vector.load %arg1[%c0, %c0_0] : memref<2x2048xf32, #tpu.memory_space<vmem>>, vector<2x2048xf32>
    %c0_1 = arith.constant 0 : index
    %c0_2 = arith.constant 0 : index
    %1 = vector.load %arg3[%c0_1, %c0_2] : memref<34x36xf32, #tpu.memory_space<vmem>>, vector<34x36xf32>
    %2 = vector.extract_strided_slice %1 {offsets = [0, 0], sizes = [32, 32], strides = [1, 1]} : vector<34x36xf32> to vector<32x32xf32>
    %3 = vector.extract_strided_slice %1 {offsets = [0, 32], sizes = [32, 1], strides = [1, 1]} : vector<34x36xf32> to vector<32x1xf32>
    %4 = vector.extract_strided_slice %1 {offsets = [0, 33], sizes = [32, 1], strides = [1, 1]} : vector<34x36xf32> to vector<32x1xf32>
    %5 = vector.extract_strided_slice %1 {offsets = [0, 34], sizes = [32, 1], strides = [1, 1]} : vector<34x36xf32> to vector<32x1xf32>
    %6 = vector.extract_strided_slice %1 {offsets = [0, 35], sizes = [32, 1], strides = [1, 1]} : vector<34x36xf32> to vector<32x1xf32>
    %7 = vector.extract_strided_slice %1 {offsets = [32, 0], sizes = [2, 32], strides = [1, 1]} : vector<34x36xf32> to vector<2x32xf32>
    %8 = vector.extract_strided_slice %1 {offsets = [32, 32], sizes = [2, 1], strides = [1, 1]} : vector<34x36xf32> to vector<2x1xf32>
    %9 = vector.extract_strided_slice %0 {offsets = [0, 0], sizes = [1, 2048], strides = [1, 1]} : vector<2x2048xf32> to vector<1x2048xf32>
    %10 = vector.broadcast %3 : vector<32x1xf32> to vector<32x2048xf32>
    %11 = vector.broadcast %9 : vector<1x2048xf32> to vector<32x2048xf32>
    %12 = arith.mulf %10, %11 : vector<32x2048xf32>
    %13 = vector.extract_strided_slice %0 {offsets = [1, 0], sizes = [1, 2048], strides = [1, 1]} : vector<2x2048xf32> to vector<1x2048xf32>
    %14 = vector.broadcast %4 : vector<32x1xf32> to vector<32x2048xf32>
    %15 = vector.broadcast %13 : vector<1x2048xf32> to vector<32x2048xf32>
    %16 = arith.mulf %14, %15 : vector<32x2048xf32>
    %17 = arith.addf %12, %16 : vector<32x2048xf32>
    %18 = vector.broadcast %5 : vector<32x1xf32> to vector<32x2048xf32>
    %19 = arith.addf %17, %18 : vector<32x2048xf32>
    %cst = arith.constant 0.000000e+00 : f32
    %20 = vector.broadcast %cst : f32 to vector<32x2048xf32>
    %21 = arith.maximumf %19, %20 : vector<32x2048xf32>
    %22 = arith.truncf %2 : vector<32x32xf32> to vector<32x32xbf16>
    %23 = arith.truncf %21 : vector<32x2048xf32> to vector<32x2048xbf16>
    %cst_3 = arith.constant dense<0.000000e+00> : vector<32x2048xf32>
    %24 = tpu.matmul %22, %23, %cst_3 {dimension_numbers = #tpu.dot_dimension_numbers<[1], [0], [0], [1], [0, 0, 1, 1], [], []>} : vector<32x32xbf16>, vector<32x2048xbf16>, vector<32x2048xf32> -> vector<32x2048xf32>
    %25 = vector.broadcast %6 : vector<32x1xf32> to vector<32x2048xf32>
    %26 = arith.addf %24, %25 : vector<32x2048xf32>
    %cst_4 = arith.constant 0.000000e+00 : f32
    %27 = vector.broadcast %cst_4 : f32 to vector<32x2048xf32>
    %28 = arith.maximumf %26, %27 : vector<32x2048xf32>
    %29 = arith.truncf %7 : vector<2x32xf32> to vector<2x32xbf16>
    %30 = arith.truncf %28 : vector<32x2048xf32> to vector<32x2048xbf16>
    %cst_5 = arith.constant dense<0.000000e+00> : vector<2x2048xf32>
    %31 = tpu.matmul %29, %30, %cst_5 {dimension_numbers = #tpu.dot_dimension_numbers<[1], [0], [0], [1], [0, 0, 1, 1], [], []>} : vector<2x32xbf16>, vector<32x2048xbf16>, vector<2x2048xf32> -> vector<2x2048xf32>
    %32 = vector.broadcast %8 : vector<2x1xf32> to vector<2x2048xf32>
    %33 = arith.addf %31, %32 : vector<2x2048xf32>
    %34 = vector.extract_strided_slice %33 {offsets = [1, 0], sizes = [1, 2048], strides = [1, 1]} : vector<2x2048xf32> to vector<1x2048xf32>
    %35 = vector.extract_strided_slice %33 {offsets = [0, 0], sizes = [1, 2048], strides = [1, 1]} : vector<2x2048xf32> to vector<1x2048xf32>
    %36 = arith.cmpf ogt, %34, %35 : vector<1x2048xf32>
    %cst_6 = arith.constant 1.000000e+00 : f32
    %cst_7 = arith.constant 0.000000e+00 : f32
    %37 = vector.broadcast %cst_6 : f32 to vector<1x2048xf32>
    %38 = vector.broadcast %cst_7 : f32 to vector<1x2048xf32>
    %39 = arith.select %36, %37, %38 : vector<1x2048xi1>, vector<1x2048xf32>
    %c0_8 = arith.constant 0 : index
    %c0_9 = arith.constant 0 : index
    %40 = vector.load %arg2[%c0_8, %c0_9] : memref<2x2048xf32, #tpu.memory_space<vmem>>, vector<2x2048xf32>
    %41 = arith.subf %33, %40 : vector<2x2048xf32>
    %42 = arith.mulf %41, %41 : vector<2x2048xf32>
    %43 = vector.extract_strided_slice %42 {offsets = [0, 0], sizes = [1, 2048], strides = [1, 1]} : vector<2x2048xf32> to vector<1x2048xf32>
    %44 = vector.extract_strided_slice %42 {offsets = [1, 0], sizes = [1, 2048], strides = [1, 1]} : vector<2x2048xf32> to vector<1x2048xf32>
    %45 = arith.addf %43, %44 : vector<1x2048xf32>
    %cst_10 = arith.constant 5.000000e-01 : f32
    %46 = vector.broadcast %cst_10 : f32 to vector<1x2048xf32>
    %47 = arith.mulf %45, %46 : vector<1x2048xf32>
    %cst_11 = arith.constant 0.000000e+00 : f32
    %48 = vector.broadcast %cst_11 : f32 to vector<4x2048xf32>
    %49 = tpu.concatenate %33, %39, %47, %48 in 0 : vector<2x2048xf32>, vector<1x2048xf32>, vector<1x2048xf32>, vector<4x2048xf32> -> vector<8x2048xf32>
    %c0_12 = arith.constant 0 : index
    %c0_13 = arith.constant 0 : index
    %50 = vector.load %arg4[%c0_12, %c0_13] : memref<8x2048xf32, #tpu.memory_space<vmem>>, vector<8x2048xf32>
    tpu.vector_store %arg4[%c0_12, %c0_13], %49 {strides = array<i32>} : memref<8x2048xf32, #tpu.memory_space<vmem>>, vector<8x2048xf32>,
    return
  }
  func.func @transform_0(%arg0: i32) -> (i32, i32) {
    %c0_i32 = arith.constant 0 : i32
    %c0_i32_0 = arith.constant 0 : i32
    return %c0_i32, %arg0 : i32, i32
  }
  func.func @transform_1(%arg0: i32) -> (i32, i32) {
    %c0_i32 = arith.constant 0 : i32
    %c0_i32_0 = arith.constant 0 : i32
    return %c0_i32, %arg0 : i32, i32
  }
  func.func @transform_2(%arg0: i32) -> (i32, i32) {
    %c0_i32 = arith.constant 0 : i32
    %c0_i32_0 = arith.constant 0 : i32
    %c0_i32_1 = arith.constant 0 : i32
    return %c0_i32, %c0_i32_0 : i32, i32
  }
  func.func @transform_3(%arg0: i32) -> (i32, i32) {
    %c0_i32 = arith.constant 0 : i32
    %c0_i32_0 = arith.constant 0 : i32
    return %c0_i32, %arg0 : i32, i32
  }
}

</mosaic_0001>

<llo_original>
// kernel: sequential_forward.1
$region0: #{sequential_forward.1}
  #allocation0 [shape = 'u32[]', space=smem, size = 0x4, offset = 0x4, fixed_abs, tag = 'smem constant byte address 0x4 - core index']
  #allocation1 [shape = 'u32[144,128]{1,0:T(1,128)}', space=vmem, size = 0x12000, scoped, tag = 'internal scratch']
  %s0 = inlined_call_operand.vmem [shape: f32[2,2048], index: 0, kind: input, shape index: {}]
  %s1 = inlined_call_operand.vmem [shape: f32[2,2048], index: 1, kind: input, shape index: {}]
  %s2 = inlined_call_operand.vmem [shape: f32[34,36], index: 2, kind: input, shape index: {}]
  %s3 = inlined_call_operand.vmem [shape: f32[8,2048], index: 3, kind: output, shape index: {}]
  %s4 = sld [smem:[#allocation0]]
  $region22: #{sequential_forward.1} parent=0
    _
  %s6 = ssub.s32 1, %s4
  %s7 = scalar_select 0, %s6, %s4
  // Predicated region
  $region2: #{sequential_forward.1} parent=0 // pred_check
    _
  $region3: #{sequential_forward.1} parent=0 // pred_check_branch
    %9 = sbr.rel (0) target = $region5
  $region4: #{sequential_forward.1} parent=0 // pred_region
    _
  $region5: #{sequential_forward.1} parent=0 // pred_fallthru
    _
  // Predicated region
  $region6: #{sequential_forward.1} parent=0 // pred_check
    _
  $region7: #{sequential_forward.1} parent=0 // pred_check_branch
    %11 = sbr.rel (0) target = $region9
  $region8: #{sequential_forward.1} parent=0 // pred_region
    _
  $region9: #{sequential_forward.1} parent=0 // pred_fallthru
    _
  // Predicated region
  $region10: #{sequential_forward.1} parent=0 // pred_check
    _
  $region11: #{sequential_forward.1} parent=0 // pred_check_branch
    %13 = sbr.rel (0) target = $region13
  $region12: #{sequential_forward.1} parent=0 // pred_region
    _
  $region13: #{sequential_forward.1} parent=0 // pred_fallthru
    _
  %v15 = vld [vmem:[%s0] sm:$0xff]
  %v16 = vld [vmem:[%s0 + $0x8] sm:$0xff]
  %v17 = vld [vmem:[%s0 + $0x10] sm:$0xff]
  %v18 = vld [vmem:[%s0 + $0x18] sm:$0xff]
  %v19 = vld [vmem:[%s2] sm:$0xff]
  %v20 = vld [vmem:[%s2 + $0x8] sm:$0xff]
  %v21 = vld [vmem:[%s2 + $0x10] sm:$0xff]
  %v22 = vld [vmem:[%s2 + $0x18] sm:$0xff]
  %v23 = vld [vmem:[%s2 + $0x20] sm:$0x3]
  %25 = vset.pattern.permute.xlu0 32
  %26 = vperm.xlu0 %25, %v19
  %v27 = vpop.permute.xlu0 %26
  %30 = vset.pattern.permute.xlu0 32
  %31 = vperm.xlu0 %30, %v20
  %v32 = vpop.permute.xlu0 %31
  %35 = vset.pattern.permute.xlu0 32
  %36 = vperm.xlu0 %35, %v21
  %v37 = vpop.permute.xlu0 %36
  %40 = vset.pattern.permute.xlu0 32
  %41 = vperm.xlu0 %40, %v22
  %v42 = vpop.permute.xlu0 %41
  %v48 = vlaneseq
  %v49 = vshrl.u32 %v48, 7
  %v50 = vsub.s32 0, %v49
  %v51 = vrot.slane %v15, %v50
  %v52 = vlaneseq
  %v53 = vshrl.u32 %v52, 7
  %v54 = vsub.s32 2, %v53
  %v55 = vrot.slane %v15, %v54
  %v56 = vlaneseq
  %v57 = vshrl.u32 %v56, 7
  %v58 = vsub.s32 4, %v57
  %v59 = vrot.slane %v15, %v58
  %v60 = vlaneseq
  %v61 = vshrl.u32 %v60, 7
  %v62 = vsub.s32 6, %v61
  %v63 = vrot.slane %v15, %v62
  %v64 = vlaneseq
  %v65 = vshrl.u32 %v64, 7
  %v66 = vsub.s32 0, %v65
  %v67 = vrot.slane %v16, %v66
  %v68 = vlaneseq
  %v69 = vshrl.u32 %v68, 7
  %v70 = vsub.s32 2, %v69
  %v71 = vrot.slane %v16, %v70
  %v72 = vlaneseq
  %v73 = vshrl.u32 %v72, 7
  %v74 = vsub.s32 4, %v73
  %v75 = vrot.slane %v16, %v74
  %v76 = vlaneseq
  %v77 = vshrl.u32 %v76, 7
  %v78 = vsub.s32 6, %v77
  %v79 = vrot.slane %v16, %v78
  %v80 = vlaneseq
  %v81 = vshrl.u32 %v80, 7
  %v82 = vsub.s32 0, %v81
  %v83 = vrot.slane %v17, %v82
  %v84 = vlaneseq
  %v85 = vshrl.u32 %v84, 7
  %v86 = vsub.s32 2, %v85
  %v87 = vrot.slane %v17, %v86
  %v88 = vlaneseq
  %v89 = vshrl.u32 %v88, 7
  %v90 = vsub.s32 4, %v89
  %v91 = vrot.slane %v17, %v90
  %v92 = vlaneseq
  %v93 = vshrl.u32 %v92, 7
  %v94 = vsub.s32 6, %v93
  %v95 = vrot.slane %v17, %v94
  %v96 = vlaneseq
  %v97 = vshrl.u32 %v96, 7
  %v98 = vsub.s32 0, %v97
  %v99 = vrot.slane %v18, %v98
  %v100 = vlaneseq
  %v101 = vshrl.u32 %v100, 7
  %v102 = vsub.s32 2, %v101
  %v103 = vrot.slane %v18, %v102
  %v104 = vlaneseq
  %v105 = vshrl.u32 %v104, 7
  %v106 = vsub.s32 4, %v105
  %v107 = vrot.slane %v18, %v106
  %v108 = vlaneseq
  %v109 = vshrl.u32 %v108, 7
  %v110 = vsub.s32 6, %v109
  %v111 = vrot.slane %v18, %v110
  %v128 = vlaneseq
  %v129 = vshrl.u32 %v128, 7
  %v130 = vsub.s32 0, %v129
  %v131 = vrot.slane %v51, %v130
  %v132 = vlaneseq
  %v133 = vshrl.u32 %v132, 7
  %v134 = vsub.s32 0, %v133
  %v135 = vrot.slane %v55, %v134
  %v136 = vlaneseq
  %v137 = vshrl.u32 %v136, 7
  %v138 = vsub.s32 0, %v137
  %v139 = vrot.slane %v59, %v138
  %v140 = vlaneseq
  %v141 = vshrl.u32 %v140, 7
  %v142 = vsub.s32 0, %v141
  %v143 = vrot.slane %v63, %v142
  %v144 = vlaneseq
  %v145 = vshrl.u32 %v144, 7
  %v146 = vsub.s32 0, %v145
  %v147 = vrot.slane %v67, %v146
  %v148 = vlaneseq
  %v149 = vshrl.u32 %v148, 7
  %v150 = vsub.s32 0, %v149
  %v151 = vrot.slane %v71, %v150
  %v152 = vlaneseq
  %v153 = vshrl.u32 %v152, 7
  %v154 = vsub.s32 0, %v153
  %v155 = vrot.slane %v75, %v154
  %v156 = vlaneseq
  %v157 = vshrl.u32 %v156, 7
  %v158 = vsub.s32 0, %v157
  %v159 = vrot.slane %v79, %v158
  %v160 = vlaneseq
  %v161 = vshrl.u32 %v160, 7
  %v162 = vsub.s32 0, %v161
  %v163 = vrot.slane %v83, %v162
  %v164 = vlaneseq
  %v165 = vshrl.u32 %v164, 7
  %v166 = vsub.s32 0, %v165
  %v167 = vrot.slane %v87, %v166
  %v168 = vlaneseq
  %v169 = vshrl.u32 %v168, 7
  %v170 = vsub.s32 0, %v169
  %v171 = vrot.slane %v91, %v170
  %v172 = vlaneseq
  %v173 = vshrl.u32 %v172, 7
  %v174 = vsub.s32 0, %v173
  %v175 = vrot.slane %v95, %v174
  %v176 = vlaneseq
  %v177 = vshrl.u32 %v176, 7
  %v178 = vsub.s32 0, %v177
  %v179 = vrot.slane %v99, %v178
  %v180 = vlaneseq
  %v181 = vshrl.u32 %v180, 7
  %v182 = vsub.s32 0, %v181
  %v183 = vrot.slane %v103, %v182
  %v184 = vlaneseq
  %v185 = vshrl.u32 %v184, 7
  %v186 = vsub.s32 0, %v185
  %v187 = vrot.slane %v107, %v186
  %v188 = vlaneseq
  %v189 = vshrl.u32 %v188, 7
  %v190 = vsub.s32 0, %v189
  %v191 = vrot.slane %v111, %v190
  %v192 = vmul.f32 %v27, %v131
  %v193 = vmul.f32 %v27, %v135
  %v194 = vmul.f32 %v27, %v139
  %v195 = vmul.f32 %v27, %v143
  %v196 = vmul.f32 %v27, %v147
  %v197 = vmul.f32 %v27, %v151
  %v198 = vmul.f32 %v27, %v155
  %v199 = vmul.f32 %v27, %v159
  %v200 = vmul.f32 %v27, %v163
  %v201 = vmul.f32 %v27, %v167
  %v202 = vmul.f32 %v27, %v171
  %v203 = vmul.f32 %v27, %v175
  %v204 = vmul.f32 %v27, %v179
  %v205 = vmul.f32 %v27, %v183
  %v206 = vmul.f32 %v27, %v187
  %v207 = vmul.f32 %v27, %v191
  %v208 = vmul.f32 %v32, %v131
  %v209 = vmul.f32 %v32, %v135
  %v210 = vmul.f32 %v32, %v139
  %v211 = vmul.f32 %v32, %v143
  %v212 = vmul.f32 %v32, %v147
  %v213 = vmul.f32 %v32, %v151
  %v214 = vmul.f32 %v32, %v155
  %v215 = vmul.f32 %v32, %v159
  %v216 = vmul.f32 %v32, %v163
  %v217 = vmul.f32 %v32, %v167
  %v218 = vmul.f32 %v32, %v171
  %v219 = vmul.f32 %v32, %v175
  %v220 = vmul.f32 %v32, %v179
  %v221 = vmul.f32 %v32, %v183
  %v222 = vmul.f32 %v32, %v187
  %v223 = vmul.f32 %v32, %v191
  %v224 = vmul.f32 %v37, %v131
  %v225 = vmul.f32 %v37, %v135
  %v226 = vmul.f32 %v37, %v139
  %v227 = vmul.f32 %v37, %v143
  %v228 = vmul.f32 %v37, %v147
  %v229 = vmul.f32 %v37, %v151
  %v230 = vmul.f32 %v37, %v155
  %v231 = vmul.f32 %v37, %v159
  %v232 = vmul.f32 %v37, %v163
  %v233 = vmul.f32 %v37, %v167
  %v234 = vmul.f32 %v37, %v171
  %v235 = vmul.f32 %v37, %v175
  %v236 = vmul.f32 %v37, %v179
  %v237 = vmul.f32 %v37, %v183
  %v238 = vmul.f32 %v37, %v187
  %v239 = vmul.f32 %v37, %v191
  %v240 = vmul.f32 %v42, %v131
  %v241 = vmul.f32 %v42, %v135
  %v242 = vmul.f32 %v42, %v139
  %v243 = vmul.f32 %v42, %v143
  %v244 = vmul.f32 %v42, %v147
  %v245 = vmul.f32 %v42, %v151
  %v246 = vmul.f32 %v42, %v155
  %v247 = vmul.f32 %v42, %v159
  %v248 = vmul.f32 %v42, %v163
  %v249 = vmul.f32 %v42, %v167
  %v250 = vmul.f32 %v42, %v171
  %v251 = vmul.f32 %v42, %v175
  %v252 = vmul.f32 %v42, %v179
  %v253 = vmul.f32 %v42, %v183
  %v254 = vmul.f32 %v42, %v187
  %v255 = vmul.f32 %v42, %v191
  %256 = vset.pattern.permute.xlu0 33
  %257 = vperm.xlu0 %256, %v19
  %v258 = vpop.permute.xlu0 %257
  %260 = vset.pattern.permute.xlu0 33
  %261 = vperm.xlu0 %260, %v20
  %v262 = vpop.permute.xlu0 %261
  %264 = vset.pattern.permute.xlu0 33
  %265 = vperm.xlu0 %264, %v21
  %v266 = vpop.permute.xlu0 %265
  %268 = vset.pattern.permute.xlu0 33
  %269 = vperm.xlu0 %268, %v22
  %v270 = vpop.permute.xlu0 %269
  %v272 = vlaneseq
  %v273 = vshrl.u32 %v272, 7
  %v274 = vsub.s32 1, %v273
  %v275 = vrot.slane %v15, %v274
  %v276 = vlaneseq
  %v277 = vshrl.u32 %v276, 7
  %v278 = vsub.s32 3, %v277
  %v279 = vrot.slane %v15, %v278
  %v280 = vlaneseq
  %v281 = vshrl.u32 %v280, 7
  %v282 = vsub.s32 5, %v281
  %v283 = vrot.slane %v15, %v282
  %v284 = vlaneseq
  %v285 = vshrl.u32 %v284, 7
  %v286 = vsub.s32 7, %v285
  %v287 = vrot.slane %v15, %v286
  %v288 = vlaneseq
  %v289 = vshrl.u32 %v288, 7
  %v290 = vsub.s32 1, %v289
  %v291 = vrot.slane %v16, %v290
  %v292 = vlaneseq
  %v293 = vshrl.u32 %v292, 7
  %v294 = vsub.s32 3, %v293
  %v295 = vrot.slane %v16, %v294
  %v296 = vlaneseq
  %v297 = vshrl.u32 %v296, 7
  %v298 = vsub.s32 5, %v297
  %v299 = vrot.slane %v16, %v298
  %v300 = vlaneseq
  %v301 = vshrl.u32 %v300, 7
  %v302 = vsub.s32 7, %v301
  %v303 = vrot.slane %v16, %v302
  %v304 = vlaneseq
  %v305 = vshrl.u32 %v304, 7
  %v306 = vsub.s32 1, %v305
  %v307 = vrot.slane %v17, %v306
  %v308 = vlaneseq
  %v309 = vshrl.u32 %v308, 7
  %v310 = vsub.s32 3, %v309
  %v311 = vrot.slane %v17, %v310
  %v312 = vlaneseq
  %v313 = vshrl.u32 %v312, 7
  %v314 = vsub.s32 5, %v313
  %v315 = vrot.slane %v17, %v314
  %v316 = vlaneseq
  %v317 = vshrl.u32 %v316, 7
  %v318 = vsub.s32 7, %v317
  %v319 = vrot.slane %v17, %v318
  %v320 = vlaneseq
  %v321 = vshrl.u32 %v320, 7
  %v322 = vsub.s32 1, %v321
  %v323 = vrot.slane %v18, %v322
  %v324 = vlaneseq
  %v325 = vshrl.u32 %v324, 7
  %v326 = vsub.s32 3, %v325
  %v327 = vrot.slane %v18, %v326
  %v328 = vlaneseq
  %v329 = vshrl.u32 %v328, 7
  %v330 = vsub.s32 5, %v329
  %v331 = vrot.slane %v18, %v330
  %v332 = vlaneseq
  %v333 = vshrl.u32 %v332, 7
  %v334 = vsub.s32 7, %v333
  %v335 = vrot.slane %v18, %v334
  %v352 = vlaneseq
  %v353 = vshrl.u32 %v352, 7
  %v354 = vsub.s32 1, %v353
  %v355 = vrot.slane %v275, %v354
  %v356 = vlaneseq
  %v357 = vshrl.u32 %v356, 7
  %v358 = vsub.s32 1, %v357
  %v359 = vrot.slane %v279, %v358
  %v360 = vlaneseq
  %v361 = vshrl.u32 %v360, 7
  %v362 = vsub.s32 1, %v361
  %v363 = vrot.slane %v283, %v362
  %v364 = vlaneseq
  %v365 = vshrl.u32 %v364, 7
  %v366 = vsub.s32 1, %v365
  %v367 = vrot.slane %v287, %v366
  %v368 = vlaneseq
  %v369 = vshrl.u32 %v368, 7
  %v370 = vsub.s32 1, %v369
  %v371 = vrot.slane %v291, %v370
  %v372 = vlaneseq
  %v373 = vshrl.u32 %v372, 7
  %v374 = vsub.s32 1, %v373
  %v375 = vrot.slane %v295, %v374
  %v376 = vlaneseq
  %v377 = vshrl.u32 %v376, 7
  %v378 = vsub.s32 1, %v377
  %v379 = vrot.slane %v299, %v378
  %v380 = vlaneseq
  %v381 = vshrl.u32 %v380, 7
  %v382 = vsub.s32 1, %v381
  %v383 = vrot.slane %v303, %v382
  %v384 = vlaneseq
  %v385 = vshrl.u32 %v384, 7
  %v386 = vsub.s32 1, %v385
  %v387 = vrot.slane %v307, %v386
  %v388 = vlaneseq
  %v389 = vshrl.u32 %v388, 7
  %v390 = vsub.s32 1, %v389
  %v391 = vrot.slane %v311, %v390
  %v392 = vlaneseq
  %v393 = vshrl.u32 %v392, 7
  %v394 = vsub.s32 1, %v393
  %v395 = vrot.slane %v315, %v394
  %v396 = vlaneseq
  %v397 = vshrl.u32 %v396, 7
  %v398 = vsub.s32 1, %v397
  %v399 = vrot.slane %v319, %v398
  %v400 = vlaneseq
  %v401 = vshrl.u32 %v400, 7
  %v402 = vsub.s32 1, %v401
  %v403 = vrot.slane %v323, %v402
  %v404 = vlaneseq
  %v405 = vshrl.u32 %v404, 7
  %v406 = vsub.s32 1, %v405
  %v407 = vrot.slane %v327, %v406
  %v408 = vlaneseq
  %v409 = vshrl.u32 %v408, 7
  %v410 = vsub.s32 1, %v409
  %v411 = vrot.slane %v331, %v410
  %v412 = vlaneseq
  %v413 = vshrl.u32 %v412, 7
  %v414 = vsub.s32 1, %v413
  %v415 = vrot.slane %v335, %v414
  %v416 = vmul.f32 %v258, %v355
  %v417 = vmul.f32 %v258, %v359
  %v418 = vmul.f32 %v258, %v363
  %v419 = vmul.f32 %v258, %v367
  %v420 = vmul.f32 %v258, %v371
  %v421 = vmul.f32 %v258, %v375
  %v422 = vmul.f32 %v258, %v379
  %v423 = vmul.f32 %v258, %v383
  %v424 = vmul.f32 %v258, %v387
  %v425 = vmul.f32 %v258, %v391
  %v426 = vmul.f32 %v258, %v395
  %v427 = vmul.f32 %v258, %v399
  %v428 = vmul.f32 %v258, %v403
  %v429 = vmul.f32 %v258, %v407
  %v430 = vmul.f32 %v258, %v411
  %v431 = vmul.f32 %v258, %v415
  %v432 = vmul.f32 %v262, %v355
  %v433 = vmul.f32 %v262, %v359
  %v434 = vmul.f32 %v262, %v363
  %v435 = vmul.f32 %v262, %v367
  %v436 = vmul.f32 %v262, %v371
  %v437 = vmul.f32 %v262, %v375
  %v438 = vmul.f32 %v262, %v379
  %v439 = vmul.f32 %v262, %v383
  %v440 = vmul.f32 %v262, %v387
  %v441 = vmul.f32 %v262, %v391
  %v442 = vmul.f32 %v262, %v395
  %v443 = vmul.f32 %v262, %v399
  %v444 = vmul.f32 %v262, %v403
  %v445 = vmul.f32 %v262, %v407
  %v446 = vmul.f32 %v262, %v411
  %v447 = vmul.f32 %v262, %v415
  %v448 = vmul.f32 %v266, %v355
  %v449 = vmul.f32 %v266, %v359
  %v450 = vmul.f32 %v266, %v363
  %v451 = vmul.f32 %v266, %v367
  %v452 = vmul.f32 %v266, %v371
  %v453 = vmul.f32 %v266, %v375
  %v454 = vmul.f32 %v266, %v379
  %v455 = vmul.f32 %v266, %v383
  %v456 = vmul.f32 %v266, %v387
  %v457 = vmul.f32 %v266, %v391
  %v458 = vmul.f32 %v266, %v395
  %v459 = vmul.f32 %v266, %v399
  %v460 = vmul.f32 %v266, %v403
  %v461 = vmul.f32 %v266, %v407
  %v462 = vmul.f32 %v266, %v411
  %v463 = vmul.f32 %v266, %v415
  %v464 = vmul.f32 %v270, %v355
  %v465 = vmul.f32 %v270, %v359
  %v466 = vmul.f32 %v270, %v363
  %v467 = vmul.f32 %v270, %v367
  %v468 = vmul.f32 %v270, %v371
  %v469 = vmul.f32 %v270, %v375
  %v470 = vmul.f32 %v270, %v379
  %v471 = vmul.f32 %v270, %v383
  %v472 = vmul.f32 %v270, %v387
  %v473 = vmul.f32 %v270, %v391
  %v474 = vmul.f32 %v270, %v395
  %v475 = vmul.f32 %v270, %v399
  %v476 = vmul.f32 %v270, %v403
  %v477 = vmul.f32 %v270, %v407
  %v478 = vmul.f32 %v270, %v411
  %v479 = vmul.f32 %v270, %v415
  %v480 = vadd.f32 %v192, %v416
  %v481 = vadd.f32 %v193, %v417
  %v482 = vadd.f32 %v194, %v418
  %v483 = vadd.f32 %v195, %v419
  %v484 = vadd.f32 %v196, %v420
  %v485 = vadd.f32 %v197, %v421
  %v486 = vadd.f32 %v198, %v422
  %v487 = vadd.f32 %v199, %v423
  %v488 = vadd.f32 %v200, %v424
  %v489 = vadd.f32 %v201, %v425
  %v490 = vadd.f32 %v202, %v426
  %v491 = vadd.f32 %v203, %v427
  %v492 = vadd.f32 %v204, %v428
  %v493 = vadd.f32 %v205, %v429
  %v494 = vadd.f32 %v206, %v430
  %v495 = vadd.f32 %v207, %v431
  %v496 = vadd.f32 %v208, %v432
  %v497 = vadd.f32 %v209, %v433
  %v498 = vadd.f32 %v210, %v434
  %v499 = vadd.f32 %v211, %v435
  %v500 = vadd.f32 %v212, %v436
  %v501 = vadd.f32 %v213, %v437
  %v502 = vadd.f32 %v214, %v438
  %v503 = vadd.f32 %v215, %v439
  %v504 = vadd.f32 %v216, %v440
  %v505 = vadd.f32 %v217, %v441
  %v506 = vadd.f32 %v218, %v442
  %v507 = vadd.f32 %v219, %v443
  %v508 = vadd.f32 %v220, %v444
  %v509 = vadd.f32 %v221, %v445
  %v510 = vadd.f32 %v222, %v446
  %v511 = vadd.f32 %v223, %v447
  %v512 = vadd.f32 %v224, %v448
  %v513 = vadd.f32 %v225, %v449
  %v514 = vadd.f32 %v226, %v450
  %v515 = vadd.f32 %v227, %v451
  %v516 = vadd.f32 %v228, %v452
  %v517 = vadd.f32 %v229, %v453
  %v518 = vadd.f32 %v230, %v454
  %v519 = vadd.f32 %v231, %v455
  %v520 = vadd.f32 %v232, %v456
  %v521 = vadd.f32 %v233, %v457
  %v522 = vadd.f32 %v234, %v458
  %v523 = vadd.f32 %v235, %v459
  %v524 = vadd.f32 %v236, %v460
  %v525 = vadd.f32 %v237, %v461
  %v526 = vadd.f32 %v238, %v462
  %v527 = vadd.f32 %v239, %v463
  %v528 = vadd.f32 %v240, %v464
  %v529 = vadd.f32 %v241, %v465
  %v530 = vadd.f32 %v242, %v466
  %v531 = vadd.f32 %v243, %v467
  %v532 = vadd.f32 %v244, %v468
  %v533 = vadd.f32 %v245, %v469
  %v534 = vadd.f32 %v246, %v470
  %v535 = vadd.f32 %v247, %v471
  %v536 = vadd.f32 %v248, %v472
  %v537 = vadd.f32 %v249, %v473
  %v538 = vadd.f32 %v250, %v474
  %v539 = vadd.f32 %v251, %v475
  %v540 = vadd.f32 %v252, %v476
  %v541 = vadd.f32 %v253, %v477
  %v542 = vadd.f32 %v254, %v478
  %v543 = vadd.f32 %v255, %v479
  %544 = vset.pattern.permute.xlu0 34
  %545 = vperm.xlu0 %544, %v19
  %v546 = vpop.permute.xlu0 %545
  %548 = vset.pattern.permute.xlu0 34
  %549 = vperm.xlu0 %548, %v20
  %v550 = vpop.permute.xlu0 %549
  %552 = vset.pattern.permute.xlu0 34
  %553 = vperm.xlu0 %552, %v21
  %v554 = vpop.permute.xlu0 %553
  %556 = vset.pattern.permute.xlu0 34
  %557 = vperm.xlu0 %556, %v22
  %v558 = vpop.permute.xlu0 %557
  %v560 = vadd.f32 %v480, %v546
  %v561 = vadd.f32 %v481, %v546
  %v562 = vadd.f32 %v482, %v546
  %v563 = vadd.f32 %v483, %v546
  %v564 = vadd.f32 %v484, %v546
  %v565 = vadd.f32 %v485, %v546
  %v566 = vadd.f32 %v486, %v546
  %v567 = vadd.f32 %v487, %v546
  %v568 = vadd.f32 %v488, %v546
  %v569 = vadd.f32 %v489, %v546
  %v570 = vadd.f32 %v490, %v546
  %v571 = vadd.f32 %v491, %v546
  %v572 = vadd.f32 %v492, %v546
  %v573 = vadd.f32 %v493, %v546
  %v574 = vadd.f32 %v494, %v546
  %v575 = vadd.f32 %v495, %v546
  %v576 = vadd.f32 %v496, %v550
  %v577 = vadd.f32 %v497, %v550
  %v578 = vadd.f32 %v498, %v550
  %v579 = vadd.f32 %v499, %v550
  %v580 = vadd.f32 %v500, %v550
  %v581 = vadd.f32 %v501, %v550
  %v582 = vadd.f32 %v502, %v550
  %v583 = vadd.f32 %v503, %v550
  %v584 = vadd.f32 %v504, %v550
  %v585 = vadd.f32 %v505, %v550
  %v586 = vadd.f32 %v506, %v550
  %v587 = vadd.f32 %v507, %v550
  %v588 = vadd.f32 %v508, %v550
  %v589 = vadd.f32 %v509, %v550
  %v590 = vadd.f32 %v510, %v550
  %v591 = vadd.f32 %v511, %v550
  %v592 = vadd.f32 %v512, %v554
  %v593 = vadd.f32 %v513, %v554
  %v594 = vadd.f32 %v514, %v554
  %v595 = vadd.f32 %v515, %v554
  %v596 = vadd.f32 %v516, %v554
  %v597 = vadd.f32 %v517, %v554
  %v598 = vadd.f32 %v518, %v554
  %v599 = vadd.f32 %v519, %v554
  %v600 = vadd.f32 %v520, %v554
  %v601 = vadd.f32 %v521, %v554
  %v602 = vadd.f32 %v522, %v554
  %v603 = vadd.f32 %v523, %v554
  %v604 = vadd.f32 %v524, %v554
  %v605 = vadd.f32 %v525, %v554
  %v606 = vadd.f32 %v526, %v554
  %v607 = vadd.f32 %v527, %v554
  %v608 = vadd.f32 %v528, %v558
  %v609 = vadd.f32 %v529, %v558
  %v610 = vadd.f32 %v530, %v558
  %v611 = vadd.f32 %v531, %v558
  %v612 = vadd.f32 %v532, %v558
  %v613 = vadd.f32 %v533, %v558
  %v614 = vadd.f32 %v534, %v558
  %v615 = vadd.f32 %v535, %v558
  %v616 = vadd.f32 %v536, %v558
  %v617 = vadd.f32 %v537, %v558
  %v618 = vadd.f32 %v538, %v558
  %v619 = vadd.f32 %v539, %v558
  %v620 = vadd.f32 %v540, %v558
  %v621 = vadd.f32 %v541, %v558
  %v622 = vadd.f32 %v542, %v558
  %v623 = vadd.f32 %v543, %v558
  %v624 = vmax.f32 %v560, 0.0
  %v625 = vmax.f32 %v561, 0.0
  %v626 = vmax.f32 %v562, 0.0
  %v627 = vmax.f32 %v563, 0.0
  %v628 = vmax.f32 %v564, 0.0
  %v629 = vmax.f32 %v565, 0.0
  %v630 = vmax.f32 %v566, 0.0
  %v631 = vmax.f32 %v567, 0.0
  %v632 = vmax.f32 %v568, 0.0
  %v633 = vmax.f32 %v569, 0.0
  %v634 = vmax.f32 %v570, 0.0
  %v635 = vmax.f32 %v571, 0.0
  %v636 = vmax.f32 %v572, 0.0
  %v637 = vmax.f32 %v573, 0.0
  %v638 = vmax.f32 %v574, 0.0
  %v639 = vmax.f32 %v575, 0.0
  %v640 = vmax.f32 %v576, 0.0
  %v641 = vmax.f32 %v577, 0.0
  %v642 = vmax.f32 %v578, 0.0
  %v643 = vmax.f32 %v579, 0.0
  %v644 = vmax.f32 %v580, 0.0
  %v645 = vmax.f32 %v581, 0.0
  %v646 = vmax.f32 %v582, 0.0
  %v647 = vmax.f32 %v583, 0.0
  %v648 = vmax.f32 %v584, 0.0
  %v649 = vmax.f32 %v585, 0.0
  %v650 = vmax.f32 %v586, 0.0
  %v651 = vmax.f32 %v587, 0.0
  %v652 = vmax.f32 %v588, 0.0
  %v653 = vmax.f32 %v589, 0.0
  %v654 = vmax.f32 %v590, 0.0
  %v655 = vmax.f32 %v591, 0.0
  %v656 = vmax.f32 %v592, 0.0
  %v657 = vmax.f32 %v593, 0.0
  %v658 = vmax.f32 %v594, 0.0
  %v659 = vmax.f32 %v595, 0.0
  %v660 = vmax.f32 %v596, 0.0
  %v661 = vmax.f32 %v597, 0.0
  %v662 = vmax.f32 %v598, 0.0
  %v663 = vmax.f32 %v599, 0.0
  %v664 = vmax.f32 %v600, 0.0
  %v665 = vmax.f32 %v601, 0.0
  %v666 = vmax.f32 %v602, 0.0
  %v667 = vmax.f32 %v603, 0.0
  %v668 = vmax.f32 %v604, 0.0
  %v669 = vmax.f32 %v605, 0.0
  %v670 = vmax.f32 %v606, 0.0
  %v671 = vmax.f32 %v607, 0.0
  %v672 = vmax.f32 %v608, 0.0
  %v673 = vmax.f32 %v609, 0.0
  %v674 = vmax.f32 %v610, 0.0
  %v675 = vmax.f32 %v611, 0.0
  %v676 = vmax.f32 %v612, 0.0
  %v677 = vmax.f32 %v613, 0.0
  %v678 = vmax.f32 %v614, 0.0
  %v679 = vmax.f32 %v615, 0.0
  %v680 = vmax.f32 %v616, 0.0
  %v681 = vmax.f32 %v617, 0.0
  %v682 = vmax.f32 %v618, 0.0
  %v683 = vmax.f32 %v619, 0.0
  %v684 = vmax.f32 %v620, 0.0
  %v685 = vmax.f32 %v621, 0.0
  %v686 = vmax.f32 %v622, 0.0
  %v687 = vmax.f32 %v623, 0.0
  %v688 = vpack.c.bf16 %v20, %v19
  %v689 = vpack.c.bf16 %v22, %v21
  %v690 = vpack.c.bf16 %v640, %v624
  %v691 = vpack.c.bf16 %v641, %v625
  %v692 = vpack.c.bf16 %v642, %v626
  %v693 = vpack.c.bf16 %v643, %v627
  %v694 = vpack.c.bf16 %v644, %v628
  %v695 = vpack.c.bf16 %v645, %v629
  %v696 = vpack.c.bf16 %v646, %v630
  %v697 = vpack.c.bf16 %v647, %v631
  %v698 = vpack.c.bf16 %v648, %v632
  %v699 = vpack.c.bf16 %v649, %v633
  %v700 = vpack.c.bf16 %v650, %v634
  %v701 = vpack.c.bf16 %v651, %v635
  %v702 = vpack.c.bf16 %v652, %v636
  %v703 = vpack.c.bf16 %v653, %v637
  %v704 = vpack.c.bf16 %v654, %v638
  %v705 = vpack.c.bf16 %v655, %v639
  %v706 = vpack.c.bf16 %v672, %v656
  %v707 = vpack.c.bf16 %v673, %v657
  %v708 = vpack.c.bf16 %v674, %v658
  %v709 = vpack.c.bf16 %v675, %v659
  %v710 = vpack.c.bf16 %v676, %v660
  %v711 = vpack.c.bf16 %v677, %v661
  %v712 = vpack.c.bf16 %v678, %v662
  %v713 = vpack.c.bf16 %v679, %v663
  %v714 = vpack.c.bf16 %v680, %v664
  %v715 = vpack.c.bf16 %v681, %v665
  %v716 = vpack.c.bf16 %v682, %v666
  %v717 = vpack.c.bf16 %v683, %v667
  %v718 = vpack.c.bf16 %v684, %v668
  %v719 = vpack.c.bf16 %v685, %v669
  %v720 = vpack.c.bf16 %v686, %v670
  %v721 = vpack.c.bf16 %v687, %v671
  %722 = vset.pattern.permute.xlu0 35
  %723 = vperm.xlu0 %722, %v19
  %v724 = vpop.permute.xlu0 %723
  %726 = vset.pattern.permute.xlu0 35
  %727 = vperm.xlu0 %726, %v20
  %v728 = vpop.permute.xlu0 %727
  %730 = vset.pattern.permute.xlu0 35
  %731 = vperm.xlu0 %730, %v21
  %v732 = vpop.permute.xlu0 %731
  %734 = vset.pattern.permute.xlu0 35
  %735 = vperm.xlu0 %734, %v22
  %v736 = vpop.permute.xlu0 %735
  %vm738 = vcmask 261120
  %v740 = vsel %vm738, %v688, 0
  %v743 = vsel %vm738, %v689, 0
  %745 = vmatprep.subr.bf16.mxu0 %v691
  %746 = vmatpush1.bf16.msra.mxu0 %v690
  %747 = vmatprep.subr.bf16.mxu0 %v707
  %748 = vmatpush1.bf16.msra.mxu0 %v706
  %749 = vmatprep.subr.bf16.mxu0 0
  %750 = vmatpush1.bf16.msra.mxu0 0
  %751 = vmatprep.subr.bf16.mxu0 0
  %752 = vmatpush1.bf16.msra.mxu0 0
  %753 = vmatprep.subr.bf16.mxu0 0
  %754 = vmatpush1.bf16.msra.mxu0 0
  %755 = vmatprep.subr.bf16.mxu0 0
  %756 = vmatpush1.bf16.msra.mxu0 0
  %757 = vmatprep.subr.bf16.mxu0 0
  %758 = vmatpush1.bf16.msra.mxu0 0
  %759 = vmatprep.subr.bf16.mxu0 0
  %760 = vmatpush1.bf16.msra.mxu0 0
  %761 = vmatprep.subr.bf16.mxu0 0
  %762 = vmatpush1.bf16.msra.mxu0 0
  %763 = vmatprep.subr.bf16.mxu0 0
  %764 = vmatpush1.bf16.msra.mxu0 0
  %765 = vmatprep.subr.bf16.mxu0 0
  %766 = vmatpush1.bf16.msra.mxu0 0
  %767 = vmatprep.subr.bf16.mxu0 0
  %768 = vmatpush1.bf16.msra.mxu0 0
  %769 = vmatprep.subr.bf16.mxu0 0
  %770 = vmatpush1.bf16.msra.mxu0 0
  %771 = vmatprep.subr.bf16.mxu0 0
  %772 = vmatpush1.bf16.msra.mxu0 0
  %773 = vmatprep.subr.bf16.mxu0 0
  %774 = vmatpush1.bf16.msra.mxu0 0
  %775 = vmatprep.subr.bf16.mxu0 0
  %776 = vmatpush1.bf16.msra.mxu0 0
  %777 = vmatprep.mubr.bf16.mxu0 0
  %778 = vmatmul.mubr.bf16.gmra.mrb[0].mxu0 %v740
  %v779 = vpop.f32.mrb[0].mxu0
  %v780 = vadd.f32 %v724, %v779
  %v781 = vpop.f32.mrb[0].mxu0
  %v782 = vadd.f32 %v724, %v781
  %v783 = vpop.f32.mrb[0].mxu0
  %v784 = vadd.f32 %v728, %v783
  %v785 = vpop.f32.mrb[0].mxu0
  %v786 = vadd.f32 %v728, %v785
  %787 = vmatprep.mubr.bf16.mxu0 0
  %788 = vmatmul.mubr.bf16.gmra.mrb[0].mxu0 %v743
  %v789 = vpop.f32.mrb[0].mxu0
  %v790 = vadd.f32 %v732, %v789
  %v791 = vpop.f32.mrb[0].mxu0
  %v792 = vadd.f32 %v732, %v791
  %v793 = vpop.f32.mrb[0].mxu0
  %v794 = vadd.f32 %v736, %v793
  %v795 = vpop.f32.mrb[0].mxu0
  %v796 = vadd.f32 %v736, %v795
  %797 = vdwg.mxu0
  %798 = vmatprep.subr.bf16.mxu0 %v693
  %799 = vmatpush1.bf16.msra.mxu0 %v692
  %800 = vmatprep.subr.bf16.mxu0 %v709
  %801 = vmatpush1.bf16.msra.mxu0 %v708
  %802 = vmatprep.subr.bf16.mxu0 0
  %803 = vmatpush1.bf16.msra.mxu0 0
  %804 = vmatprep.subr.bf16.mxu0 0
  %805 = vmatpush1.bf16.msra.mxu0 0
  %806 = vmatprep.subr.bf16.mxu0 0
  %807 = vmatpush1.bf16.msra.mxu0 0
  %808 = vmatprep.subr.bf16.mxu0 0
  %809 = vmatpush1.bf16.msra.mxu0 0
  %810 = vmatprep.subr.bf16.mxu0 0
  %811 = vmatpush1.bf16.msra.mxu0 0
  %812 = vmatprep.subr.bf16.mxu0 0
  %813 = vmatpush1.bf16.msra.mxu0 0
  %814 = vmatprep.subr.bf16.mxu0 0
  %815 = vmatpush1.bf16.msra.mxu0 0
  %816 = vmatprep.subr.bf16.mxu0 0
  %817 = vmatpush1.bf16.msra.mxu0 0
  %818 = vmatprep.subr.bf16.mxu0 0
  %819 = vmatpush1.bf16.msra.mxu0 0
  %820 = vmatprep.subr.bf16.mxu0 0
  %821 = vmatpush1.bf16.msra.mxu0 0
  %822 = vmatprep.subr.bf16.mxu0 0
  %823 = vmatpush1.bf16.msra.mxu0 0
  %824 = vmatprep.subr.bf16.mxu0 0
  %825 = vmatpush1.bf16.msra.mxu0 0
  %826 = vmatprep.subr.bf16.mxu0 0
  %827 = vmatpush1.bf16.msra.mxu0 0
  %828 = vmatprep.subr.bf16.mxu0 0
  %829 = vmatpush1.bf16.msra.mxu0 0
  %830 = vmatprep.mubr.bf16.mxu0 0
  %831 = vmatmul.mubr.bf16.gmra.mrb[0].mxu0 %v740
  %v832 = vpop.f32.mrb[0].mxu0
  %v833 = vadd.f32 %v724, %v832
  %v834 = vpop.f32.mrb[0].mxu0
  %v835 = vadd.f32 %v724, %v834
  %v836 = vpop.f32.mrb[0].mxu0
  %v837 = vadd.f32 %v728, %v836
  %v838 = vpop.f32.mrb[0].mxu0
  %v839 = vadd.f32 %v728, %v838
  %840 = vmatprep.mubr.bf16.mxu0 0
  %841 = vmatmul.mubr.bf16.gmra.mrb[0].mxu0 %v743
  %v842 = vpop.f32.mrb[0].mxu0
  %v843 = vadd.f32 %v732, %v842
  %v844 = vpop.f32.mrb[0].mxu0
  %v845 = vadd.f32 %v732, %v844
  %v846 = vpop.f32.mrb[0].mxu0
  %v847 = vadd.f32 %v736, %v846
  %v848 = vpop.f32.mrb[0].mxu0
  %v849 = vadd.f32 %v736, %v848
  %850 = vdwg.mxu0
  %851 = vmatprep.subr.bf16.mxu0 %v695
  %852 = vmatpush1.bf16.msra.mxu0 %v694
  %853 = vmatprep.subr.bf16.mxu0 %v711
  %854 = vmatpush1.bf16.msra.mxu0 %v710
  %855 = vmatprep.subr.bf16.mxu0 0
  %856 = vmatpush1.bf16.msra.mxu0 0
  %857 = vmatprep.subr.bf16.mxu0 0
  %858 = vmatpush1.bf16.msra.mxu0 0
  %859 = vmatprep.subr.bf16.mxu0 0
  %860 = vmatpush1.bf16.msra.mxu0 0
  %861 = vmatprep.subr.bf16.mxu0 0
  %862 = vmatpush1.bf16.msra.mxu0 0
  %863 = vmatprep.subr.bf16.mxu0 0
  %864 = vmatpush1.bf16.msra.mxu0 0
  %865 = vmatprep.subr.bf16.mxu0 0
  %866 = vmatpush1.bf16.msra.mxu0 0
  %867 = vmatprep.subr.bf16.mxu0 0
  %868 = vmatpush1.bf16.msra.mxu0 0
  %869 = vmatprep.subr.bf16.mxu0 0
  %870 = vmatpush1.bf16.msra.mxu0 0
  %871 = vmatprep.subr.bf16.mxu0 0
  %872 = vmatpush1.bf16.msra.mxu0 0
  %873 = vmatprep.subr.bf16.mxu0 0
  %874 = vmatpush1.bf16.msra.mxu0 0
  %875 = vmatprep.subr.bf16.mxu0 0
  %876 = vmatpush1.bf16.msra.mxu0 0
  %877 = vmatprep.subr.bf16.mxu0 0
  %878 = vmatpush1.bf16.msra.mxu0 0
  %879 = vmatprep.subr.bf16.mxu0 0
  %880 = vmatpush1.bf16.msra.mxu0 0
  %881 = vmatprep.subr.bf16.mxu0 0
  %882 = vmatpush1.bf16.msra.mxu0 0
  %883 = vmatprep.mubr.bf16.mxu0 0
  %884 = vmatmul.mubr.bf16.gmra.mrb[0].mxu0 %v740
  %v885 = vpop.f32.mrb[0].mxu0
  %v886 = vadd.f32 %v724, %v885
  %v887 = vpop.f32.mrb[0].mxu0
  %v888 = vadd.f32 %v724, %v887
  %v889 = vpop.f32.mrb[0].mxu0
  %v890 = vadd.f32 %v728, %v889
  %v891 = vpop.f32.mrb[0].mxu0
  %v892 = vadd.f32 %v728, %v891
  %893 = vmatprep.mubr.bf16.mxu0 0
  %894 = vmatmul.mubr.bf16.gmra.mrb[0].mxu0 %v743
  %v895 = vpop.f32.mrb[0].mxu0
  %v896 = vadd.f32 %v732, %v895
  %v897 = vpop.f32.mrb[0].mxu0
  %v898 = vadd.f32 %v732, %v897
  %v899 = vpop.f32.mrb[0].mxu0
  %v900 = vadd.f32 %v736, %v899
  %v901 = vpop.f32.mrb[0].mxu0
  %v902 = vadd.f32 %v736, %v901
  %903 = vdwg.mxu0
  %904 = vmatprep.subr.bf16.mxu0 %v697
  %905 = vmatpush1.bf16.msra.mxu0 %v696
  %906 = vmatprep.subr.bf16.mxu0 %v713
  %907 = vmatpush1.bf16.msra.mxu0 %v712
  %908 = vmatprep.subr.bf16.mxu0 0
  %909 = vmatpush1.bf16.msra.mxu0 0
  %910 = vmatprep.subr.bf16.mxu0 0
  %911 = vmatpush1.bf16.msra.mxu0 0
  %912 = vmatprep.subr.bf16.mxu0 0
  %913 = vmatpush1.bf16.msra.mxu0 0
  %914 = vmatprep.subr.bf16.mxu0 0
  %915 = vmatpush1.bf16.msra.mxu0 0
  %916 = vmatprep.subr.bf16.mxu0 0
  %917 = vmatpush1.bf16.msra.mxu0 0
  %918 = vmatprep.subr.bf16.mxu0 0
  %919 = vmatpush1.bf16.msra.mxu0 0
  %920 = vmatprep.subr.bf16.mxu0 0
  %921 = vmatpush1.bf16.msra.mxu0 0
  %922 = vmatprep.subr.bf16.mxu0 0
  %923 = vmatpush1.bf16.msra.mxu0 0
  %924 = vmatprep.subr.bf16.mxu0 0
  %925 = vmatpush1.bf16.msra.mxu0 0
  %926 = vmatprep.subr.bf16.mxu0 0
  %927 = vmatpush1.bf16.msra.mxu0 0
  %928 = vmatprep.subr.bf16.mxu0 0
  %929 = vmatpush1.bf16.msra.mxu0 0
  %930 = vmatprep.subr.bf16.mxu0 0
  %931 = vmatpush1.bf16.msra.mxu0 0
  %932 = vmatprep.subr.bf16.mxu0 0
  %933 = vmatpush1.bf16.msra.mxu0 0
  %934 = vmatprep.subr.bf16.mxu0 0
  %935 = vmatpush1.bf16.msra.mxu0 0
  %936 = vmatprep.mubr.bf16.mxu0 0
  %937 = vmatmul.mubr.bf16.gmra.mrb[0].mxu0 %v740
  %v938 = vpop.f32.mrb[0].mxu0
  %v939 = vadd.f32 %v724, %v938
  %v940 = vpop.f32.mrb[0].mxu0
  %v941 = vadd.f32 %v724, %v940
  %v942 = vpop.f32.mrb[0].mxu0
  %v943 = vadd.f32 %v728, %v942
  %v944 = vpop.f32.mrb[0].mxu0
  %v945 = vadd.f32 %v728, %v944
  %946 = vmatprep.mubr.bf16.mxu0 0
  %947 = vmatmul.mubr.bf16.gmra.mrb[0].mxu0 %v743
  %v948 = vpop.f32.mrb[0].mxu0
  %v949 = vadd.f32 %v732, %v948
  %v950 = vpop.f32.mrb[0].mxu0
  %v951 = vadd.f32 %v732, %v950
  %v952 = vpop.f32.mrb[0].mxu0
  %v953 = vadd.f32 %v736, %v952
  %v954 = vpop.f32.mrb[0].mxu0
  %v955 = vadd.f32 %v736, %v954
  %956 = vdwg.mxu0
  %957 = vmatprep.subr.bf16.mxu0 %v699
  %958 = vmatpush1.bf16.msra.mxu0 %v698
  %959 = vmatprep.subr.bf16.mxu0 %v715
  %960 = vmatpush1.bf16.msra.mxu0 %v714
  %961 = vmatprep.subr.bf16.mxu0 0
  %962 = vmatpush1.bf16.msra.mxu0 0
  %963 = vmatprep.subr.bf16.mxu0 0
  %964 = vmatpush1.bf16.msra.mxu0 0
  %965 = vmatprep.subr.bf16.mxu0 0
  %966 = vmatpush1.bf16.msra.mxu0 0
  %967 = vmatprep.subr.bf16.mxu0 0
  %968 = vmatpush1.bf16.msra.mxu0 0
  %969 = vmatprep.subr.bf16.mxu0 0
  %970 = vmatpush1.bf16.msra.mxu0 0
  %971 = vmatprep.subr.bf16.mxu0 0
  %972 = vmatpush1.bf16.msra.mxu0 0
  %973 = vmatprep.subr.bf16.mxu0 0
  %974 = vmatpush1.bf16.msra.mxu0 0
  %975 = vmatprep.subr.bf16.mxu0 0
  %976 = vmatpush1.bf16.msra.mxu0 0
  %977 = vmatprep.subr.bf16.mxu0 0
  %978 = vmatpush1.bf16.msra.mxu0 0
  %979 = vmatprep.subr.bf16.mxu0 0
  %980 = vmatpush1.bf16.msra.mxu0 0
  %981 = vmatprep.subr.bf16.mxu0 0
  %982 = vmatpush1.bf16.msra.mxu0 0
  %983 = vmatprep.subr.bf16.mxu0 0
  %984 = vmatpush1.bf16.msra.mxu0 0
  %985 = vmatprep.subr.bf16.mxu0 0
  %986 = vmatpush1.bf16.msra.mxu0 0
  %987 = vmatprep.subr.bf16.mxu0 0
  %988 = vmatpush1.bf16.msra.mxu0 0
  %989 = vmatprep.mubr.bf16.mxu0 0
  %990 = vmatmul.mubr.bf16.gmra.mrb[0].mxu0 %v740
  %v991 = vpop.f32.mrb[0].mxu0
  %v992 = vadd.f32 %v724, %v991
  %v993 = vpop.f32.mrb[0].mxu0
  %v994 = vadd.f32 %v724, %v993
  %v995 = vpop.f32.mrb[0].mxu0
  %v996 = vadd.f32 %v728, %v995
  %v997 = vpop.f32.mrb[0].mxu0
  %v998 = vadd.f32 %v728, %v997
  %999 = vmatprep.mubr.bf16.mxu0 0
  %1000 = vmatmul.mubr.bf16.gmra.mrb[0].mxu0 %v743
  %v1001 = vpop.f32.mrb[0].mxu0
  %v1002 = vadd.f32 %v732, %v1001
  %v1003 = vpop.f32.mrb[0].mxu0
  %v1004 = vadd.f32 %v732, %v1003
  %v1005 = vpop.f32.mrb[0].mxu0
  %v1006 = vadd.f32 %v736, %v1005
  %v1007 = vpop.f32.mrb[0].mxu0
  %v1008 = vadd.f32 %v736, %v1007
  %1009 = vdwg.mxu0
  %1010 = vmatprep.subr.bf16.mxu0 %v701
  %1011 = vmatpush1.bf16.msra.mxu0 %v700
  %1012 = vmatprep.subr.bf16.mxu0 %v717
  %1013 = vmatpush1.bf16.msra.mxu0 %v716
  %1014 = vmatprep.subr.bf16.mxu0 0
  %1015 = vmatpush1.bf16.msra.mxu0 0
  %1016 = vmatprep.subr.bf16.mxu0 0
  %1017 = vmatpush1.bf16.msra.mxu0 0
  %1018 = vmatprep.subr.bf16.mxu0 0
  %1019 = vmatpush1.bf16.msra.mxu0 0
  %1020 = vmatprep.subr.bf16.mxu0 0
  %1021 = vmatpush1.bf16.msra.mxu0 0
  %1022 = vmatprep.subr.bf16.mxu0 0
  %1023 = vmatpush1.bf16.msra.mxu0 0
  %1024 = vmatprep.subr.bf16.mxu0 0
  %1025 = vmatpush1.bf16.msra.mxu0 0
  %1026 = vmatprep.subr.bf16.mxu0 0
  %1027 = vmatpush1.bf16.msra.mxu0 0
  %1028 = vmatprep.subr.bf16.mxu0 0
  %1029 = vmatpush1.bf16.msra.mxu0 0
  %1030 = vmatprep.subr.bf16.mxu0 0
  %1031 = vmatpush1.bf16.msra.mxu0 0
  %1032 = vmatprep.subr.bf16.mxu0 0
  %1033 = vmatpush1.bf16.msra.mxu0 0
  %1034 = vmatprep.subr.bf16.mxu0 0
  %1035 = vmatpush1.bf16.msra.mxu0 0
  %1036 = vmatprep.subr.bf16.mxu0 0
  %1037 = vmatpush1.bf16.msra.mxu0 0
  %1038 = vmatprep.subr.bf16.mxu0 0
  %1039 = vmatpush1.bf16.msra.mxu0 0
  %1040 = vmatprep.subr.bf16.mxu0 0
  %1041 = vmatpush1.bf16.msra.mxu0 0
  %1042 = vmatprep.mubr.bf16.mxu0 0
  %1043 = vmatmul.mubr.bf16.gmra.mrb[0].mxu0 %v740
  %v1044 = vpop.f32.mrb[0].mxu0
  %v1045 = vadd.f32 %v724, %v1044
  %v1046 = vpop.f32.mrb[0].mxu0
  %v1047 = vadd.f32 %v724, %v1046
  %v1048 = vpop.f32.mrb[0].mxu0
  %v1049 = vadd.f32 %v728, %v1048
  %v1050 = vpop.f32.mrb[0].mxu0
  %v1051 = vadd.f32 %v728, %v1050
  %1052 = vmatprep.mubr.bf16.mxu0 0
  %1053 = vmatmul.mubr.bf16.gmra.mrb[0].mxu0 %v743
  %v1054 = vpop.f32.mrb[0].mxu0
  %v1055 = vadd.f32 %v732, %v1054
  %v1056 = vpop.f32.mrb[0].mxu0
  %v1057 = vadd.f32 %v732, %v1056
  %v1058 = vpop.f32.mrb[0].mxu0
  %v1059 = vadd.f32 %v736, %v1058
  %v1060 = vpop.f32.mrb[0].mxu0
  %v1061 = vadd.f32 %v736, %v1060
  %1062 = vdwg.mxu0
  %1063 = vmatprep.subr.bf16.mxu0 %v703
  %1064 = vmatpush1.bf16.msra.mxu0 %v702
  %1065 = vmatprep.subr.bf16.mxu0 %v719
  %1066 = vmatpush1.bf16.msra.mxu0 %v718
  %1067 = vmatprep.subr.bf16.mxu0 0
  %1068 = vmatpush1.bf16.msra.mxu0 0
  %1069 = vmatprep.subr.bf16.mxu0 0
  %1070 = vmatpush1.bf16.msra.mxu0 0
  %1071 = vmatprep.subr.bf16.mxu0 0
  %1072 = vmatpush1.bf16.msra.mxu0 0
  %1073 = vmatprep.subr.bf16.mxu0 0
  %1074 = vmatpush1.bf16.msra.mxu0 0
  %1075 = vmatprep.subr.bf16.mxu0 0
  %1076 = vmatpush1.bf16.msra.mxu0 0
  %1077 = vmatprep.subr.bf16.mxu0 0
  %1078 = vmatpush1.bf16.msra.mxu0 0
  %1079 = vmatprep.subr.bf16.mxu0 0
  %1080 = vmatpush1.bf16.msra.mxu0 0
  %1081 = vmatprep.subr.bf16.mxu0 0
  %1082 = vmatpush1.bf16.msra.mxu0 0
  %1083 = vmatprep.subr.bf16.mxu0 0
  %1084 = vmatpush1.bf16.msra.mxu0 0
  %1085 = vmatprep.subr.bf16.mxu0 0
  %1086 = vmatpush1.bf16.msra.mxu0 0
  %1087 = vmatprep.subr.bf16.mxu0 0
  %1088 = vmatpush1.bf16.msra.mxu0 0
  %1089 = vmatprep.subr.bf16.mxu0 0
  %1090 = vmatpush1.bf16.msra.mxu0 0
  %1091 = vmatprep.subr.bf16.mxu0 0
  %1092 = vmatpush1.bf16.msra.mxu0 0
  %1093 = vmatprep.subr.bf16.mxu0 0
  %1094 = vmatpush1.bf16.msra.mxu0 0
  %1095 = vmatprep.mubr.bf16.mxu0 0
  %1096 = vmatmul.mubr.bf16.gmra.mrb[0].mxu0 %v740
  %v1097 = vpop.f32.mrb[0].mxu0
  %v1098 = vadd.f32 %v724, %v1097
  %v1099 = vpop.f32.mrb[0].mxu0
  %v1100 = vadd.f32 %v724, %v1099
  %v1101 = vpop.f32.mrb[0].mxu0
  %v1102 = vadd.f32 %v728, %v1101
  %v1103 = vpop.f32.mrb[0].mxu0
  %v1104 = vadd.f32 %v728, %v1103
  %1105 = vmatprep.mubr.bf16.mxu0 0
  %1106 = vmatmul.mubr.bf16.gmra.mrb[0].mxu0 %v743
  %v1107 = vpop.f32.mrb[0].mxu0
  %v1108 = vadd.f32 %v732, %v1107
  %v1109 = vpop.f32.mrb[0].mxu0
  %v1110 = vadd.f32 %v732, %v1109
  %v1111 = vpop.f32.mrb[0].mxu0
  %v1112 = vadd.f32 %v736, %v1111
  %v1113 = vpop.f32.mrb[0].mxu0
  %v1114 = vadd.f32 %v736, %v1113
  %1115 = vdwg.mxu0
  %1116 = vmatprep.subr.bf16.mxu0 %v705
  %1117 = vmatpush1.bf16.msra.mxu0 %v704
  %1118 = vmatprep.subr.bf16.mxu0 %v721
  %1119 = vmatpush1.bf16.msra.mxu0 %v720
  %1120 = vmatprep.subr.bf16.mxu0 0
  %1121 = vmatpush1.bf16.msra.mxu0 0
  %1122 = vmatprep.subr.bf16.mxu0 0
  %1123 = vmatpush1.bf16.msra.mxu0 0
  %1124 = vmatprep.subr.bf16.mxu0 0
  %1125 = vmatpush1.bf16.msra.mxu0 0
  %1126 = vmatprep.subr.bf16.mxu0 0
  %1127 = vmatpush1.bf16.msra.mxu0 0
  %1128 = vmatprep.subr.bf16.mxu0 0
  %1129 = vmatpush1.bf16.msra.mxu0 0
  %1130 = vmatprep.subr.bf16.mxu0 0
  %1131 = vmatpush1.bf16.msra.mxu0 0
  %1132 = vmatprep.subr.bf16.mxu0 0
  %1133 = vmatpush1.bf16.msra.mxu0 0
  %1134 = vmatprep.subr.bf16.mxu0 0
  %1135 = vmatpush1.bf16.msra.mxu0 0
  %1136 = vmatprep.subr.bf16.mxu0 0
  %1137 = vmatpush1.bf16.msra.mxu0 0
  %1138 = vmatprep.subr.bf16.mxu0 0
  %1139 = vmatpush1.bf16.msra.mxu0 0
  %1140 = vmatprep.subr.bf16.mxu0 0
  %1141 = vmatpush1.bf16.msra.mxu0 0
  %1142 = vmatprep.subr.bf16.mxu0 0
  %1143 = vmatpush1.bf16.msra.mxu0 0
  %1144 = vmatprep.subr.bf16.mxu0 0
  %1145 = vmatpush1.bf16.msra.mxu0 0
  %1146 = vmatprep.subr.bf16.mxu0 0
  %1147 = vmatpush1.bf16.msra.mxu0 0
  %1148 = vmatprep.mubr.bf16.mxu0 0
  %1149 = vmatmul.mubr.bf16.gmra.mrb[0].mxu0 %v740
  %v1150 = vpop.f32.mrb[0].mxu0
  %v1151 = vadd.f32 %v724, %v1150
  %v1152 = vpop.f32.mrb[0].mxu0
  %v1153 = vadd.f32 %v724, %v1152
  %v1154 = vpop.f32.mrb[0].mxu0
  %v1155 = vadd.f32 %v728, %v1154
  %v1156 = vpop.f32.mrb[0].mxu0
  %v1157 = vadd.f32 %v728, %v1156
  %1158 = vmatprep.mubr.bf16.mxu0 0
  %1159 = vmatmul.mubr.bf16.gmra.mrb[0].mxu0 %v743
  %v1160 = vpop.f32.mrb[0].mxu0
  %v1161 = vadd.f32 %v732, %v1160
  %v1162 = vpop.f32.mrb[0].mxu0
  %v1163 = vadd.f32 %v732, %v1162
  %v1164 = vpop.f32.mrb[0].mxu0
  %v1165 = vadd.f32 %v736, %v1164
  %v1166 = vpop.f32.mrb[0].mxu0
  %v1167 = vadd.f32 %v736, %v1166
  %1168 = vdwg.mxu0
  %v1169 = vmax.f32 %v780, 0.0
  %v1170 = vmax.f32 %v782, 0.0
  %v1171 = vmax.f32 %v833, 0.0
  %v1172 = vmax.f32 %v835, 0.0
  %v1173 = vmax.f32 %v886, 0.0
  %v1174 = vmax.f32 %v888, 0.0
  %v1175 = vmax.f32 %v939, 0.0
  %v1176 = vmax.f32 %v941, 0.0
  %v1177 = vmax.f32 %v992, 0.0
  %v1178 = vmax.f32 %v994, 0.0
  %v1179 = vmax.f32 %v1045, 0.0
  %v1180 = vmax.f32 %v1047, 0.0
  %v1181 = vmax.f32 %v1098, 0.0
  %v1182 = vmax.f32 %v1100, 0.0
  %v1183 = vmax.f32 %v1151, 0.0
  %v1184 = vmax.f32 %v1153, 0.0
  %v1185 = vmax.f32 %v784, 0.0
  %v1186 = vmax.f32 %v786, 0.0
  %v1187 = vmax.f32 %v837, 0.0
  %v1188 = vmax.f32 %v839, 0.0
  %v1189 = vmax.f32 %v890, 0.0
  %v1190 = vmax.f32 %v892, 0.0
  %v1191 = vmax.f32 %v943, 0.0
  %v1192 = vmax.f32 %v945, 0.0
  %v1193 = vmax.f32 %v996, 0.0
  %v1194 = vmax.f32 %v998, 0.0
  %v1195 = vmax.f32 %v1049, 0.0
  %v1196 = vmax.f32 %v1051, 0.0
  %v1197 = vmax.f32 %v1102, 0.0
  %v1198 = vmax.f32 %v1104, 0.0
  %v1199 = vmax.f32 %v1155, 0.0
  %v1200 = vmax.f32 %v1157, 0.0
  %v1201 = vmax.f32 %v790, 0.0
  %v1202 = vmax.f32 %v792, 0.0
  %v1203 = vmax.f32 %v843, 0.0
  %v1204 = vmax.f32 %v845, 0.0
  %v1205 = vmax.f32 %v896, 0.0
  %v1206 = vmax.f32 %v898, 0.0
  %v1207 = vmax.f32 %v949, 0.0
  %v1208 = vmax.f32 %v951, 0.0
  %v1209 = vmax.f32 %v1002, 0.0
  %v1210 = vmax.f32 %v1004, 0.0
  %v1211 = vmax.f32 %v1055, 0.0
  %v1212 = vmax.f32 %v1057, 0.0
  %v1213 = vmax.f32 %v1108, 0.0
  %v1214 = vmax.f32 %v1110, 0.0
  %v1215 = vmax.f32 %v1161, 0.0
  %v1216 = vmax.f32 %v1163, 0.0
  %v1217 = vmax.f32 %v794, 0.0
  %v1218 = vmax.f32 %v796, 0.0
  %v1219 = vmax.f32 %v847, 0.0
  %v1220 = vmax.f32 %v849, 0.0
  %v1221 = vmax.f32 %v900, 0.0
  %v1222 = vmax.f32 %v902, 0.0
  %v1223 = vmax.f32 %v953, 0.0
  %v1224 = vmax.f32 %v955, 0.0
  %v1225 = vmax.f32 %v1006, 0.0
  %v1226 = vmax.f32 %v1008, 0.0
  %v1227 = vmax.f32 %v1059, 0.0
  %v1228 = vmax.f32 %v1061, 0.0
  %v1229 = vmax.f32 %v1112, 0.0
  %v1230 = vmax.f32 %v1114, 0.0
  %v1231 = vmax.f32 %v1165, 0.0
  %v1232 = vmax.f32 %v1167, 0.0
  %v1233 = vpack.c.bf16 %v23, %v23
  %v1234 = vpack.c.bf16 %v1185, %v1169
  %v1235 = vpack.c.bf16 %v1186, %v1170
  %v1236 = vpack.c.bf16 %v1187, %v1171
  %v1237 = vpack.c.bf16 %v1188, %v1172
  %v1238 = vpack.c.bf16 %v1189, %v1173
  %v1239 = vpack.c.bf16 %v1190, %v1174
  %v1240 = vpack.c.bf16 %v1191, %v1175
  %v1241 = vpack.c.bf16 %v1192, %v1176
  %v1242 = vpack.c.bf16 %v1193, %v1177
  %v1243 = vpack.c.bf16 %v1194, %v1178
  %v1244 = vpack.c.bf16 %v1195, %v1179
  %v1245 = vpack.c.bf16 %v1196, %v1180
  %v1246 = vpack.c.bf16 %v1197, %v1181
  %v1247 = vpack.c.bf16 %v1198, %v1182
  %v1248 = vpack.c.bf16 %v1199, %v1183
  %v1249 = vpack.c.bf16 %v1200, %v1184
  %v1250 = vpack.c.bf16 %v1217, %v1201
  %v1251 = vpack.c.bf16 %v1218, %v1202
  %v1252 = vpack.c.bf16 %v1219, %v1203
  %v1253 = vpack.c.bf16 %v1220, %v1204
  %v1254 = vpack.c.bf16 %v1221, %v1205
  %v1255 = vpack.c.bf16 %v1222, %v1206
  %v1256 = vpack.c.bf16 %v1223, %v1207
  %v1257 = vpack.c.bf16 %v1224, %v1208
  %v1258 = vpack.c.bf16 %v1225, %v1209
  %v1259 = vpack.c.bf16 %v1226, %v1210
  %v1260 = vpack.c.bf16 %v1227, %v1211
  %v1261 = vpack.c.bf16 %v1228, %v1212
  %v1262 = vpack.c.bf16 %v1229, %v1213
  %v1263 = vpack.c.bf16 %v1230, %v1214
  %v1264 = vpack.c.bf16 %v1231, %v1215
  %v1265 = vpack.c.bf16 %v1232, %v1216
  %1267 = vset.pattern.permute.xlu0 32
  %1268 = vperm.xlu0 %1267, %v23
  %v1269 = vpop.permute.xlu0 %1268
  %v1272 = vsel %vm738, %v1233, 0
  %1274 = vmatprep.subr.bf16.mxu0 %v1235
  %1275 = vmatpush1.bf16.msra.mxu0 %v1234
  %1276 = vmatprep.subr.bf16.mxu0 %v1251
  %1277 = vmatpush1.bf16.msra.mxu0 %v1250
  %1278 = vmatprep.subr.bf16.mxu0 0
  %1279 = vmatpush1.bf16.msra.mxu0 0
  %1280 = vmatprep.subr.bf16.mxu0 0
  %1281 = vmatpush1.bf16.msra.mxu0 0
  %1282 = vmatprep.subr.bf16.mxu0 0
  %1283 = vmatpush1.bf16.msra.mxu0 0
  %1284 = vmatprep.subr.bf16.mxu0 0
  %1285 = vmatpush1.bf16.msra.mxu0 0
  %1286 = vmatprep.subr.bf16.mxu0 0
  %1287 = vmatpush1.bf16.msra.mxu0 0
  %1288 = vmatprep.subr.bf16.mxu0 0
  %1289 = vmatpush1.bf16.msra.mxu0 0
  %1290 = vmatprep.subr.bf16.mxu0 0
  %1291 = vmatpush1.bf16.msra.mxu0 0
  %1292 = vmatprep.subr.bf16.mxu0 0
  %1293 = vmatpush1.bf16.msra.mxu0 0
  %1294 = vmatprep.subr.bf16.mxu0 0
  %1295 = vmatpush1.bf16.msra.mxu0 0
  %1296 = vmatprep.subr.bf16.mxu0 0
  %1297 = vmatpush1.bf16.msra.mxu0 0
  %1298 = vmatprep.subr.bf16.mxu0 0
  %1299 = vmatpush1.bf16.msra.mxu0 0
  %1300 = vmatprep.subr.bf16.mxu0 0
  %1301 = vmatpush1.bf16.msra.mxu0 0
  %1302 = vmatprep.subr.bf16.mxu0 0
  %1303 = vmatpush1.bf16.msra.mxu0 0
  %1304 = vmatprep.subr.bf16.mxu0 0
  %1305 = vmatpush1.bf16.msra.mxu0 0
  %1306 = vmatprep.mubr.bf16.mxu0 0
  %1307 = vmatmul.mubr.bf16.gmra.mrb[0].mxu0 %v1272
  %v1308 = vpop.f32.mrb[0].mxu0
  %v1309 = vadd.f32 %v1269, %v1308
  %v1310 = vpop.f32.mrb[0].mxu0
  %v1311 = vadd.f32 %v1269, %v1310
  %v1312 = vpop.f32.mrb[0].mxu0
  %v1313 = vpop.f32.mrb[0].mxu0
  %1314 = vdwg.mxu0
  %1315 = vmatprep.subr.bf16.mxu0 %v1237
  %1316 = vmatpush1.bf16.msra.mxu0 %v1236
  %1317 = vmatprep.subr.bf16.mxu0 %v1253
  %1318 = vmatpush1.bf16.msra.mxu0 %v1252
  %1319 = vmatprep.subr.bf16.mxu0 0
  %1320 = vmatpush1.bf16.msra.mxu0 0
  %1321 = vmatprep.subr.bf16.mxu0 0
  %1322 = vmatpush1.bf16.msra.mxu0 0
  %1323 = vmatprep.subr.bf16.mxu0 0
  %1324 = vmatpush1.bf16.msra.mxu0 0
  %1325 = vmatprep.subr.bf16.mxu0 0
  %1326 = vmatpush1.bf16.msra.mxu0 0
  %1327 = vmatprep.subr.bf16.mxu0 0
  %1328 = vmatpush1.bf16.msra.mxu0 0
  %1329 = vmatprep.subr.bf16.mxu0 0
  %1330 = vmatpush1.bf16.msra.mxu0 0
  %1331 = vmatprep.subr.bf16.mxu0 0
  %1332 = vmatpush1.bf16.msra.mxu0 0
  %1333 = vmatprep.subr.bf16.mxu0 0
  %1334 = vmatpush1.bf16.msra.mxu0 0
  %1335 = vmatprep.subr.bf16.mxu0 0
  %1336 = vmatpush1.bf16.msra.mxu0 0
  %1337 = vmatprep.subr.bf16.mxu0 0
  %1338 = vmatpush1.bf16.msra.mxu0 0
  %1339 = vmatprep.subr.bf16.mxu0 0
  %1340 = vmatpush1.bf16.msra.mxu0 0
  %1341 = vmatprep.subr.bf16.mxu0 0
  %1342 = vmatpush1.bf16.msra.mxu0 0
  %1343 = vmatprep.subr.bf16.mxu0 0
  %1344 = vmatpush1.bf16.msra.mxu0 0
  %1345 = vmatprep.subr.bf16.mxu0 0
  %1346 = vmatpush1.bf16.msra.mxu0 0
  %1347 = vmatprep.mubr.bf16.mxu0 0
  %1348 = vmatmul.mubr.bf16.gmra.mrb[0].mxu0 %v1272
  %v1349 = vpop.f32.mrb[0].mxu0
  %v1350 = vadd.f32 %v1269, %v1349
  %v1351 = vpop.f32.mrb[0].mxu0
  %v1352 = vadd.f32 %v1269, %v1351
  %v1353 = vpop.f32.mrb[0].mxu0
  %v1354 = vpop.f32.mrb[0].mxu0
  %1355 = vdwg.mxu0
  %1356 = vmatprep.subr.bf16.mxu0 %v1239
  %1357 = vmatpush1.bf16.msra.mxu0 %v1238
  %1358 = vmatprep.subr.bf16.mxu0 %v1255
  %1359 = vmatpush1.bf16.msra.mxu0 %v1254
  %1360 = vmatprep.subr.bf16.mxu0 0
  %1361 = vmatpush1.bf16.msra.mxu0 0
  %1362 = vmatprep.subr.bf16.mxu0 0
  %1363 = vmatpush1.bf16.msra.mxu0 0
  %1364 = vmatprep.subr.bf16.mxu0 0
  %1365 = vmatpush1.bf16.msra.mxu0 0
  %1366 = vmatprep.subr.bf16.mxu0 0
  %1367 = vmatpush1.bf16.msra.mxu0 0
  %1368 = vmatprep.subr.bf16.mxu0 0
  %1369 = vmatpush1.bf16.msra.mxu0 0
  %1370 = vmatprep.subr.bf16.mxu0 0
  %1371 = vmatpush1.bf16.msra.mxu0 0
  %1372 = vmatprep.subr.bf16.mxu0 0
  %1373 = vmatpush1.bf16.msra.mxu0 0
  %1374 = vmatprep.subr.bf16.mxu0 0
  %1375 = vmatpush1.bf16.msra.mxu0 0
  %1376 = vmatprep.subr.bf16.mxu0 0
  %1377 = vmatpush1.bf16.msra.mxu0 0
  %1378 = vmatprep.subr.bf16.mxu0 0
  %1379 = vmatpush1.bf16.msra.mxu0 0
  %1380 = vmatprep.subr.bf16.mxu0 0
  %1381 = vmatpush1.bf16.msra.mxu0 0
  %1382 = vmatprep.subr.bf16.mxu0 0
  %1383 = vmatpush1.bf16.msra.mxu0 0
  %1384 = vmatprep.subr.bf16.mxu0 0
  %1385 = vmatpush1.bf16.msra.mxu0 0
  %1386 = vmatprep.subr.bf16.mxu0 0
  %1387 = vmatpush1.bf16.msra.mxu0 0
  %1388 = vmatprep.mubr.bf16.mxu0 0
  %1389 = vmatmul.mubr.bf16.gmra.mrb[0].mxu0 %v1272
  %v1390 = vpop.f32.mrb[0].mxu0
  %v1391 = vadd.f32 %v1269, %v1390
  %v1392 = vpop.f32.mrb[0].mxu0
  %v1393 = vadd.f32 %v1269, %v1392
  %v1394 = vpop.f32.mrb[0].mxu0
  %v1395 = vpop.f32.mrb[0].mxu0
  %1396 = vdwg.mxu0
  %1397 = vmatprep.subr.bf16.mxu0 %v1241
  %1398 = vmatpush1.bf16.msra.mxu0 %v1240
  %1399 = vmatprep.subr.bf16.mxu0 %v1257
  %1400 = vmatpush1.bf16.msra.mxu0 %v1256
  %1401 = vmatprep.subr.bf16.mxu0 0
  %1402 = vmatpush1.bf16.msra.mxu0 0
  %1403 = vmatprep.subr.bf16.mxu0 0
  %1404 = vmatpush1.bf16.msra.mxu0 0
  %1405 = vmatprep.subr.bf16.mxu0 0
  %1406 = vmatpush1.bf16.msra.mxu0 0
  %1407 = vmatprep.subr.bf16.mxu0 0
  %1408 = vmatpush1.bf16.msra.mxu0 0
  %1409 = vmatprep.subr.bf16.mxu0 0
  %1410 = vmatpush1.bf16.msra.mxu0 0
  %1411 = vmatprep.subr.bf16.mxu0 0
  %1412 = vmatpush1.bf16.msra.mxu0 0
  %1413 = vmatprep.subr.bf16.mxu0 0
  %1414 = vmatpush1.bf16.msra.mxu0 0
  %1415 = vmatprep.subr.bf16.mxu0 0
  %1416 = vmatpush1.bf16.msra.mxu0 0
  %1417 = vmatprep.subr.bf16.mxu0 0
  %1418 = vmatpush1.bf16.msra.mxu0 0
  %1419 = vmatprep.subr.bf16.mxu0 0
  %1420 = vmatpush1.bf16.msra.mxu0 0
  %1421 = vmatprep.subr.bf16.mxu0 0
  %1422 = vmatpush1.bf16.msra.mxu0 0
  %1423 = vmatprep.subr.bf16.mxu0 0
  %1424 = vmatpush1.bf16.msra.mxu0 0
  %1425 = vmatprep.subr.bf16.mxu0 0
  %1426 = vmatpush1.bf16.msra.mxu0 0
  %1427 = vmatprep.subr.bf16.mxu0 0
  %1428 = vmatpush1.bf16.msra.mxu0 0
  %1429 = vmatprep.mubr.bf16.mxu0 0
  %1430 = vmatmul.mubr.bf16.gmra.mrb[0].mxu0 %v1272
  %v1431 = vpop.f32.mrb[0].mxu0
  %v1432 = vadd.f32 %v1269, %v1431
  %v1433 = vpop.f32.mrb[0].mxu0
  %v1434 = vadd.f32 %v1269, %v1433
  %v1435 = vpop.f32.mrb[0].mxu0
  %v1436 = vpop.f32.mrb[0].mxu0
  %1437 = vdwg.mxu0
  %1438 = vmatprep.subr.bf16.mxu0 %v1243
  %1439 = vmatpush1.bf16.msra.mxu0 %v1242
  %1440 = vmatprep.subr.bf16.mxu0 %v1259
  %1441 = vmatpush1.bf16.msra.mxu0 %v1258
  %1442 = vmatprep.subr.bf16.mxu0 0
  %1443 = vmatpush1.bf16.msra.mxu0 0
  %1444 = vmatprep.subr.bf16.mxu0 0
  %1445 = vmatpush1.bf16.msra.mxu0 0
  %1446 = vmatprep.subr.bf16.mxu0 0
  %1447 = vmatpush1.bf16.msra.mxu0 0
  %1448 = vmatprep.subr.bf16.mxu0 0
  %1449 = vmatpush1.bf16.msra.mxu0 0
  %1450 = vmatprep.subr.bf16.mxu0 0
  %1451 = vmatpush1.bf16.msra.mxu0 0
  %1452 = vmatprep.subr.bf16.mxu0 0
  %1453 = vmatpush1.bf16.msra.mxu0 0
  %1454 = vmatprep.subr.bf16.mxu0 0
  %1455 = vmatpush1.bf16.msra.mxu0 0
  %1456 = vmatprep.subr.bf16.mxu0 0
  %1457 = vmatpush1.bf16.msra.mxu0 0
  %1458 = vmatprep.subr.bf16.mxu0 0
  %1459 = vmatpush1.bf16.msra.mxu0 0
  %1460 = vmatprep.subr.bf16.mxu0 0
  %1461 = vmatpush1.bf16.msra.mxu0 0
  %1462 = vmatprep.subr.bf16.mxu0 0
  %1463 = vmatpush1.bf16.msra.mxu0 0
  %1464 = vmatprep.subr.bf16.mxu0 0
  %1465 = vmatpush1.bf16.msra.mxu0 0
  %1466 = vmatprep.subr.bf16.mxu0 0
  %1467 = vmatpush1.bf16.msra.mxu0 0
  %1468 = vmatprep.subr.bf16.mxu0 0
  %1469 = vmatpush1.bf16.msra.mxu0 0
  %1470 = vmatprep.mubr.bf16.mxu0 0
  %1471 = vmatmul.mubr.bf16.gmra.mrb[0].mxu0 %v1272
  %v1472 = vpop.f32.mrb[0].mxu0
  %v1473 = vadd.f32 %v1269, %v1472
  %v1474 = vpop.f32.mrb[0].mxu0
  %v1475 = vadd.f32 %v1269, %v1474
  %v1476 = vpop.f32.mrb[0].mxu0
  %v1477 = vpop.f32.mrb[0].mxu0
  %1478 = vdwg.mxu0
  %1479 = vmatprep.subr.bf16.mxu0 %v1245
  %1480 = vmatpush1.bf16.msra.mxu0 %v1244
  %1481 = vmatprep.subr.bf16.mxu0 %v1261
  %1482 = vmatpush1.bf16.msra.mxu0 %v1260
  %1483 = vmatprep.subr.bf16.mxu0 0
  %1484 = vmatpush1.bf16.msra.mxu0 0
  %1485 = vmatprep.subr.bf16.mxu0 0
  %1486 = vmatpush1.bf16.msra.mxu0 0
  %1487 = vmatprep.subr.bf16.mxu0 0
  %1488 = vmatpush1.bf16.msra.mxu0 0
  %1489 = vmatprep.subr.bf16.mxu0 0
  %1490 = vmatpush1.bf16.msra.mxu0 0
  %1491 = vmatprep.subr.bf16.mxu0 0
  %1492 = vmatpush1.bf16.msra.mxu0 0
  %1493 = vmatprep.subr.bf16.mxu0 0
  %1494 = vmatpush1.bf16.msra.mxu0 0
  %1495 = vmatprep.subr.bf16.mxu0 0
  %1496 = vmatpush1.bf16.msra.mxu0 0
  %1497 = vmatprep.subr.bf16.mxu0 0
  %1498 = vmatpush1.bf16.msra.mxu0 0
  %1499 = vmatprep.subr.bf16.mxu0 0
  %1500 = vmatpush1.bf16.msra.mxu0 0
  %1501 = vmatprep.subr.bf16.mxu0 0
  %1502 = vmatpush1.bf16.msra.mxu0 0
  %1503 = vmatprep.subr.bf16.mxu0 0
  %1504 = vmatpush1.bf16.msra.mxu0 0
  %1505 = vmatprep.subr.bf16.mxu0 0
  %1506 = vmatpush1.bf16.msra.mxu0 0
  %1507 = vmatprep.subr.bf16.mxu0 0
  %1508 = vmatpush1.bf16.msra.mxu0 0
  %1509 = vmatprep.subr.bf16.mxu0 0
  %1510 = vmatpush1.bf16.msra.mxu0 0
  %1511 = vmatprep.mubr.bf16.mxu0 0
  %1512 = vmatmul.mubr.bf16.gmra.mrb[0].mxu0 %v1272
  %v1513 = vpop.f32.mrb[0].mxu0
  %v1514 = vadd.f32 %v1269, %v1513
  %v1515 = vpop.f32.mrb[0].mxu0
  %v1516 = vadd.f32 %v1269, %v1515
  %v1517 = vpop.f32.mrb[0].mxu0
  %v1518 = vpop.f32.mrb[0].mxu0
  %1519 = vdwg.mxu0
  %1520 = vmatprep.subr.bf16.mxu0 %v1247
  %1521 = vmatpush1.bf16.msra.mxu0 %v1246
  %1522 = vmatprep.subr.bf16.mxu0 %v1263
  %1523 = vmatpush1.bf16.msra.mxu0 %v1262
  %1524 = vmatprep.subr.bf16.mxu0 0
  %1525 = vmatpush1.bf16.msra.mxu0 0
  %1526 = vmatprep.subr.bf16.mxu0 0
  %1527 = vmatpush1.bf16.msra.mxu0 0
  %1528 = vmatprep.subr.bf16.mxu0 0
  %1529 = vmatpush1.bf16.msra.mxu0 0
  %1530 = vmatprep.subr.bf16.mxu0 0
  %1531 = vmatpush1.bf16.msra.mxu0 0
  %1532 = vmatprep.subr.bf16.mxu0 0
  %1533 = vmatpush1.bf16.msra.mxu0 0
  %1534 = vmatprep.subr.bf16.mxu0 0
  %1535 = vmatpush1.bf16.msra.mxu0 0
  %1536 = vmatprep.subr.bf16.mxu0 0
  %1537 = vmatpush1.bf16.msra.mxu0 0
  %1538 = vmatprep.subr.bf16.mxu0 0
  %1539 = vmatpush1.bf16.msra.mxu0 0
  %1540 = vmatprep.subr.bf16.mxu0 0
  %1541 = vmatpush1.bf16.msra.mxu0 0
  %1542 = vmatprep.subr.bf16.mxu0 0
  %1543 = vmatpush1.bf16.msra.mxu0 0
  %1544 = vmatprep.subr.bf16.mxu0 0
  %1545 = vmatpush1.bf16.msra.mxu0 0
  %1546 = vmatprep.subr.bf16.mxu0 0
  %1547 = vmatpush1.bf16.msra.mxu0 0
  %1548 = vmatprep.subr.bf16.mxu0 0
  %1549 = vmatpush1.bf16.msra.mxu0 0
  %1550 = vmatprep.subr.bf16.mxu0 0
  %1551 = vmatpush1.bf16.msra.mxu0 0
  %1552 = vmatprep.mubr.bf16.mxu0 0
  %1553 = vmatmul.mubr.bf16.gmra.mrb[0].mxu0 %v1272
  %v1554 = vpop.f32.mrb[0].mxu0
  %v1555 = vadd.f32 %v1269, %v1554
  %v1556 = vpop.f32.mrb[0].mxu0
  %v1557 = vadd.f32 %v1269, %v1556
  %v1558 = vpop.f32.mrb[0].mxu0
  %v1559 = vpop.f32.mrb[0].mxu0
  %1560 = vdwg.mxu0
  %1561 = vmatprep.subr.bf16.mxu0 %v1249
  %1562 = vmatpush1.bf16.msra.mxu0 %v1248
  %1563 = vmatprep.subr.bf16.mxu0 %v1265
  %1564 = vmatpush1.bf16.msra.mxu0 %v1264
  %1565 = vmatprep.subr.bf16.mxu0 0
  %1566 = vmatpush1.bf16.msra.mxu0 0
  %1567 = vmatprep.subr.bf16.mxu0 0
  %1568 = vmatpush1.bf16.msra.mxu0 0
  %1569 = vmatprep.subr.bf16.mxu0 0
  %1570 = vmatpush1.bf16.msra.mxu0 0
  %1571 = vmatprep.subr.bf16.mxu0 0
  %1572 = vmatpush1.bf16.msra.mxu0 0
  %1573 = vmatprep.subr.bf16.mxu0 0
  %1574 = vmatpush1.bf16.msra.mxu0 0
  %1575 = vmatprep.subr.bf16.mxu0 0
  %1576 = vmatpush1.bf16.msra.mxu0 0
  %1577 = vmatprep.subr.bf16.mxu0 0
  %1578 = vmatpush1.bf16.msra.mxu0 0
  %1579 = vmatprep.subr.bf16.mxu0 0
  %1580 = vmatpush1.bf16.msra.mxu0 0
  %1581 = vmatprep.subr.bf16.mxu0 0
  %1582 = vmatpush1.bf16.msra.mxu0 0
  %1583 = vmatprep.subr.bf16.mxu0 0
  %1584 = vmatpush1.bf16.msra.mxu0 0
  %1585 = vmatprep.subr.bf16.mxu0 0
  %1586 = vmatpush1.bf16.msra.mxu0 0
  %1587 = vmatprep.subr.bf16.mxu0 0
  %1588 = vmatpush1.bf16.msra.mxu0 0
  %1589 = vmatprep.subr.bf16.mxu0 0
  %1590 = vmatpush1.bf16.msra.mxu0 0
  %1591 = vmatprep.subr.bf16.mxu0 0
  %1592 = vmatpush1.bf16.msra.mxu0 0
  %1593 = vmatprep.mubr.bf16.mxu0 0
  %1594 = vmatmul.mubr.bf16.gmra.mrb[0].mxu0 %v1272
  %v1595 = vpop.f32.mrb[0].mxu0
  %v1596 = vadd.f32 %v1269, %v1595
  %v1597 = vpop.f32.mrb[0].mxu0
  %v1598 = vadd.f32 %v1269, %v1597
  %v1599 = vpop.f32.mrb[0].mxu0
  %v1600 = vpop.f32.mrb[0].mxu0
  %1601 = vdwg.mxu0
  %v1618 = vrot.slane %v1309, 7
  %v1619 = vrot.slane %v1311, 7
  %v1620 = vrot.slane %v1350, 7
  %v1621 = vrot.slane %v1352, 7
  %v1622 = vrot.slane %v1391, 7
  %v1623 = vrot.slane %v1393, 7
  %v1624 = vrot.slane %v1432, 7
  %v1625 = vrot.slane %v1434, 7
  %v1626 = vrot.slane %v1473, 7
  %v1627 = vrot.slane %v1475, 7
  %v1628 = vrot.slane %v1514, 7
  %v1629 = vrot.slane %v1516, 7
  %v1630 = vrot.slane %v1555, 7
  %v1631 = vrot.slane %v1557, 7
  %v1632 = vrot.slane %v1596, 7
  %v1633 = vrot.slane %v1598, 7
  %vm1650 = vcmp.gt.f32.partialorder %v1309, %v1618
  %vm1651 = vcmp.gt.f32.partialorder %v1311, %v1619
  %vm1652 = vcmp.gt.f32.partialorder %v1350, %v1620
  %vm1653 = vcmp.gt.f32.partialorder %v1352, %v1621
  %vm1654 = vcmp.gt.f32.partialorder %v1391, %v1622
  %vm1655 = vcmp.gt.f32.partialorder %v1393, %v1623
  %vm1656 = vcmp.gt.f32.partialorder %v1432, %v1624
  %vm1657 = vcmp.gt.f32.partialorder %v1434, %v1625
  %vm1658 = vcmp.gt.f32.partialorder %v1473, %v1626
  %vm1659 = vcmp.gt.f32.partialorder %v1475, %v1627
  %vm1660 = vcmp.gt.f32.partialorder %v1514, %v1628
  %vm1661 = vcmp.gt.f32.partialorder %v1516, %v1629
  %vm1662 = vcmp.gt.f32.partialorder %v1555, %v1630
  %vm1663 = vcmp.gt.f32.partialorder %v1557, %v1631
  %vm1664 = vcmp.gt.f32.partialorder %v1596, %v1632
  %vm1665 = vcmp.gt.f32.partialorder %v1598, %v1633
  %v1666 = vsel %vm1650, 1.0, 0.0
  %v1667 = vsel %vm1651, 1.0, 0.0
  %v1668 = vsel %vm1652, 1.0, 0.0
  %v1669 = vsel %vm1653, 1.0, 0.0
  %v1670 = vsel %vm1654, 1.0, 0.0
  %v1671 = vsel %vm1655, 1.0, 0.0
  %v1672 = vsel %vm1656, 1.0, 0.0
  %v1673 = vsel %vm1657, 1.0, 0.0
  %v1674 = vsel %vm1658, 1.0, 0.0
  %v1675 = vsel %vm1659, 1.0, 0.0
  %v1676 = vsel %vm1660, 1.0, 0.0
  %v1677 = vsel %vm1661, 1.0, 0.0
  %v1678 = vsel %vm1662, 1.0, 0.0
  %v1679 = vsel %vm1663, 1.0, 0.0
  %v1680 = vsel %vm1664, 1.0, 0.0
  %v1681 = vsel %vm1665, 1.0, 0.0
  %v1682 = vld [vmem:[%s1] sm:$0xff]
  %v1683 = vld [vmem:[%s1 + $0x8] sm:$0xff]
  %v1684 = vld [vmem:[%s1 + $0x10] sm:$0xff]
  %v1685 = vld [vmem:[%s1 + $0x18] sm:$0xff]
  %v1690 = vcombine.high %v1682, %v1682
  %v1692 = vunpack.c.l.s4 1983009808
  %v1693 = vunpack.c.0.s8 %v1692
  %v1694 = vlaneseq
  %v1695 = vshrl.u32 %v1694, 7
  %v1696 = vsub.s32 %v1693, %v1695
  %v1697 = vrot.slane %v1682, %v1696
  %v1699 = vunpack.c.l.s4 1983009808
  %v1700 = vunpack.c.0.s8 %v1699
  %v1701 = vlaneseq
  %v1702 = vshrl.u32 %v1701, 7
  %v1703 = vsub.s32 %v1700, %v1702
  %v1704 = vrot.slane %v1690, %v1703
  %v1705 = vcombine.high %v1697, %v1697
  %v1706 = vcombine.high %v1704, %v1704
  %v1707 = vcombine.high %v1683, %v1683
  %v1709 = vunpack.c.l.s4 1983009808
  %v1710 = vunpack.c.0.s8 %v1709
  %v1711 = vlaneseq
  %v1712 = vshrl.u32 %v1711, 7
  %v1713 = vsub.s32 %v1710, %v1712
  %v1714 = vrot.slane %v1683, %v1713
  %v1716 = vunpack.c.l.s4 1983009808
  %v1717 = vunpack.c.0.s8 %v1716
  %v1718 = vlaneseq
  %v1719 = vshrl.u32 %v1718, 7
  %v1720 = vsub.s32 %v1717, %v1719
  %v1721 = vrot.slane %v1707, %v1720
  %v1722 = vcombine.high %v1714, %v1714
  %v1723 = vcombine.high %v1721, %v1721
  %v1724 = vcombine.high %v1684, %v1684
  %v1726 = vunpack.c.l.s4 1983009808
  %v1727 = vunpack.c.0.s8 %v1726
  %v1728 = vlaneseq
  %v1729 = vshrl.u32 %v1728, 7
  %v1730 = vsub.s32 %v1727, %v1729
  %v1731 = vrot.slane %v1684, %v1730
  %v1733 = vunpack.c.l.s4 1983009808
  %v1734 = vunpack.c.0.s8 %v1733
  %v1735 = vlaneseq
  %v1736 = vshrl.u32 %v1735, 7
  %v1737 = vsub.s32 %v1734, %v1736
  %v1738 = vrot.slane %v1724, %v1737
  %v1739 = vcombine.high %v1731, %v1731
  %v1740 = vcombine.high %v1738, %v1738
  %v1741 = vcombine.high %v1685, %v1685
  %v1743 = vunpack.c.l.s4 1983009808
  %v1744 = vunpack.c.0.s8 %v1743
  %v1745 = vlaneseq
  %v1746 = vshrl.u32 %v1745, 7
  %v1747 = vsub.s32 %v1744, %v1746
  %v1748 = vrot.slane %v1685, %v1747
  %v1750 = vunpack.c.l.s4 1983009808
  %v1751 = vunpack.c.0.s8 %v1750
  %v1752 = vlaneseq
  %v1753 = vshrl.u32 %v1752, 7
  %v1754 = vsub.s32 %v1751, %v1753
  %v1755 = vrot.slane %v1741, %v1754
  %v1756 = vcombine.high %v1748, %v1748
  %v1757 = vcombine.high %v1755, %v1755
  %v1774 = vsub.f32 %v1309, %v1697
  %v1775 = vsub.f32 %v1311, %v1705
  %v1776 = vsub.f32 %v1350, %v1704
  %v1777 = vsub.f32 %v1352, %v1706
  %v1778 = vsub.f32 %v1391, %v1714
  %v1779 = vsub.f32 %v1393, %v1722
  %v1780 = vsub.f32 %v1432, %v1721
  %v1781 = vsub.f32 %v1434, %v1723
  %v1782 = vsub.f32 %v1473, %v1731
  %v1783 = vsub.f32 %v1475, %v1739
  %v1784 = vsub.f32 %v1514, %v1738
  %v1785 = vsub.f32 %v1516, %v1740
  %v1786 = vsub.f32 %v1555, %v1748
  %v1787 = vsub.f32 %v1557, %v1756
  %v1788 = vsub.f32 %v1596, %v1755
  %v1789 = vsub.f32 %v1598, %v1757
  %v1790 = vmul.f32 %v1774, %v1774
  %v1791 = vmul.f32 %v1775, %v1775
  %v1792 = vmul.f32 %v1776, %v1776
  %v1793 = vmul.f32 %v1777, %v1777
  %v1794 = vmul.f32 %v1778, %v1778
  %v1795 = vmul.f32 %v1779, %v1779
  %v1796 = vmul.f32 %v1780, %v1780
  %v1797 = vmul.f32 %v1781, %v1781
  %v1798 = vmul.f32 %v1782, %v1782
  %v1799 = vmul.f32 %v1783, %v1783
  %v1800 = vmul.f32 %v1784, %v1784
  %v1801 = vmul.f32 %v1785, %v1785
  %v1802 = vmul.f32 %v1786, %v1786
  %v1803 = vmul.f32 %v1787, %v1787
  %v1804 = vmul.f32 %v1788, %v1788
  %v1805 = vmul.f32 %v1789, %v1789
  %v1822 = vrot.slane %v1790, 1
  %v1823 = vrot.slane %v1791, 1
  %v1824 = vrot.slane %v1792, 1
  %v1825 = vrot.slane %v1793, 1
  %v1826 = vrot.slane %v1794, 1
  %v1827 = vrot.slane %v1795, 1
  %v1828 = vrot.slane %v1796, 1
  %v1829 = vrot.slane %v1797, 1
  %v1830 = vrot.slane %v1798, 1
  %v1831 = vrot.slane %v1799, 1
  %v1832 = vrot.slane %v1800, 1
  %v1833 = vrot.slane %v1801, 1
  %v1834 = vrot.slane %v1802, 1
  %v1835 = vrot.slane %v1803, 1
  %v1836 = vrot.slane %v1804, 1
  %v1837 = vrot.slane %v1805, 1
  %v1854 = vadd.f32 %v1790, %v1822
  %v1855 = vadd.f32 %v1791, %v1823
  %v1856 = vadd.f32 %v1792, %v1824
  %v1857 = vadd.f32 %v1793, %v1825
  %v1858 = vadd.f32 %v1794, %v1826
  %v1859 = vadd.f32 %v1795, %v1827
  %v1860 = vadd.f32 %v1796, %v1828
  %v1861 = vadd.f32 %v1797, %v1829
  %v1862 = vadd.f32 %v1798, %v1830
  %v1863 = vadd.f32 %v1799, %v1831
  %v1864 = vadd.f32 %v1800, %v1832
  %v1865 = vadd.f32 %v1801, %v1833
  %v1866 = vadd.f32 %v1802, %v1834
  %v1867 = vadd.f32 %v1803, %v1835
  %v1868 = vadd.f32 %v1804, %v1836
  %v1869 = vadd.f32 %v1805, %v1837
  %v1870 = vmul.f32 %v1854, 0.5
  %v1871 = vmul.f32 %v1855, 0.5
  %v1872 = vmul.f32 %v1856, 0.5
  %v1873 = vmul.f32 %v1857, 0.5
  %v1874 = vmul.f32 %v1858, 0.5
  %v1875 = vmul.f32 %v1859, 0.5
  %v1876 = vmul.f32 %v1860, 0.5
  %v1877 = vmul.f32 %v1861, 0.5
  %v1878 = vmul.f32 %v1862, 0.5
  %v1879 = vmul.f32 %v1863, 0.5
  %v1880 = vmul.f32 %v1864, 0.5
  %v1881 = vmul.f32 %v1865, 0.5
  %v1882 = vmul.f32 %v1866, 0.5
  %v1883 = vmul.f32 %v1867, 0.5
  %v1884 = vmul.f32 %v1868, 0.5
  %v1885 = vmul.f32 %v1869, 0.5
  %v1902 = vrot.slane %v1666, 7
  %v1903 = vrot.slane %v1667, 7
  %v1904 = vrot.slane %v1668, 7
  %v1905 = vrot.slane %v1669, 7
  %v1906 = vrot.slane %v1670, 7
  %v1907 = vrot.slane %v1671, 7
  %v1908 = vrot.slane %v1672, 7
  %v1909 = vrot.slane %v1673, 7
  %v1910 = vrot.slane %v1674, 7
  %v1911 = vrot.slane %v1675, 7
  %v1912 = vrot.slane %v1676, 7
  %v1913 = vrot.slane %v1677, 7
  %v1914 = vrot.slane %v1678, 7
  %v1915 = vrot.slane %v1679, 7
  %v1916 = vrot.slane %v1680, 7
  %v1917 = vrot.slane %v1681, 7
  %v1950 = vrot.slane %v1870, 5
  %v1951 = vrot.slane %v1871, 5
  %v1952 = vrot.slane %v1872, 5
  %v1953 = vrot.slane %v1873, 5
  %v1954 = vrot.slane %v1874, 5
  %v1955 = vrot.slane %v1875, 5
  %v1956 = vrot.slane %v1876, 5
  %v1957 = vrot.slane %v1877, 5
  %v1958 = vrot.slane %v1878, 5
  %v1959 = vrot.slane %v1879, 5
  %v1960 = vrot.slane %v1880, 5
  %v1961 = vrot.slane %v1881, 5
  %v1962 = vrot.slane %v1882, 5
  %v1963 = vrot.slane %v1883, 5
  %v1964 = vrot.slane %v1884, 5
  %v1965 = vrot.slane %v1885, 5
  %vm1982 = vcmask 1041408
  %v1983 = vsel %vm1982, %v1309, %v1902
  %v1984 = vsel %vm1982, %v1311, %v1903
  %v1985 = vsel %vm1982, %v1350, %v1904
  %v1986 = vsel %vm1982, %v1352, %v1905
  %v1987 = vsel %vm1982, %v1391, %v1906
  %v1988 = vsel %vm1982, %v1393, %v1907
  %v1989 = vsel %vm1982, %v1432, %v1908
  %v1990 = vsel %vm1982, %v1434, %v1909
  %v1991 = vsel %vm1982, %v1473, %v1910
  %v1992 = vsel %vm1982, %v1475, %v1911
  %v1993 = vsel %vm1982, %v1514, %v1912
  %v1994 = vsel %vm1982, %v1516, %v1913
  %v1995 = vsel %vm1982, %v1555, %v1914
  %v1996 = vsel %vm1982, %v1557, %v1915
  %v1997 = vsel %vm1982, %v1596, %v1916
  %v1998 = vsel %vm1982, %v1598, %v1917
  %vm1999 = vcmask 1042432
  %v2000 = vsel %vm1999, %v1983, %v1950
  %v2001 = vsel %vm1999, %v1984, %v1951
  %v2002 = vsel %vm1999, %v1985, %v1952
  %v2003 = vsel %vm1999, %v1986, %v1953
  %v2004 = vsel %vm1999, %v1987, %v1954
  %v2005 = vsel %vm1999, %v1988, %v1955
  %v2006 = vsel %vm1999, %v1989, %v1956
  %v2007 = vsel %vm1999, %v1990, %v1957
  %v2008 = vsel %vm1999, %v1991, %v1958
  %v2009 = vsel %vm1999, %v1992, %v1959
  %v2010 = vsel %vm1999, %v1993, %v1960
  %v2011 = vsel %vm1999, %v1994, %v1961
  %v2012 = vsel %vm1999, %v1995, %v1962
  %v2013 = vsel %vm1999, %v1996, %v1963
  %v2014 = vsel %vm1999, %v1997, %v1964
  %v2015 = vsel %vm1999, %v1998, %v1965
  %vm2016 = vcmask 1043456
  %v2017 = vsel %vm2016, %v2000, 0.0
  %v2018 = vsel %vm2016, %v2001, 0.0
  %v2019 = vsel %vm2016, %v2002, 0.0
  %v2020 = vsel %vm2016, %v2003, 0.0
  %v2021 = vsel %vm2016, %v2004, 0.0
  %v2022 = vsel %vm2016, %v2005, 0.0
  %v2023 = vsel %vm2016, %v2006, 0.0
  %v2024 = vsel %vm2016, %v2007, 0.0
  %v2025 = vsel %vm2016, %v2008, 0.0
  %v2026 = vsel %vm2016, %v2009, 0.0
  %v2027 = vsel %vm2016, %v2010, 0.0
  %v2028 = vsel %vm2016, %v2011, 0.0
  %v2029 = vsel %vm2016, %v2012, 0.0
  %v2030 = vsel %vm2016, %v2013, 0.0
  %v2031 = vsel %vm2016, %v2014, 0.0
  %v2032 = vsel %vm2016, %v2015, 0.0
  %2033 = vst [vmem:[%s3] sm:$0xff] %v2017
  %2034 = vst [vmem:[%s3 + $0x8] sm:$0xff] %v2018
  %2035 = vst [vmem:[%s3 + $0x10] sm:$0xff] %v2019
  %2036 = vst [vmem:[%s3 + $0x18] sm:$0xff] %v2020
  %2037 = vst [vmem:[%s3 + $0x20] sm:$0xff] %v2021
  %2038 = vst [vmem:[%s3 + $0x28] sm:$0xff] %v2022
  %2039 = vst [vmem:[%s3 + $0x30] sm:$0xff] %v2023
  %2040 = vst [vmem:[%s3 + $0x38] sm:$0xff] %v2024
  %2041 = vst [vmem:[%s3 + $0x40] sm:$0xff] %v2025
  %2042 = vst [vmem:[%s3 + $0x48] sm:$0xff] %v2026
  %2043 = vst [vmem:[%s3 + $0x50] sm:$0xff] %v2027
  %2044 = vst [vmem:[%s3 + $0x58] sm:$0xff] %v2028
  %2045 = vst [vmem:[%s3 + $0x60] sm:$0xff] %v2029
  %2046 = vst [vmem:[%s3 + $0x68] sm:$0xff] %v2030
  %2047 = vst [vmem:[%s3 + $0x70] sm:$0xff] %v2031
  %2048 = vst [vmem:[%s3 + $0x78] sm:$0xff] %v2032
  // Predicated region
  $region14: #{sequential_forward.1} parent=0 // pred_check
    _
  $region15: #{sequential_forward.1} parent=0 // pred_check_branch
    %2050 = sbr.rel (0) target = $region17
  $region16: #{sequential_forward.1} parent=0 // pred_region
    _
  $region17: #{sequential_forward.1} parent=0 // pred_fallthru
    _
  // Predicated region
  $region18: #{sequential_forward.1} parent=0 // pred_check
    _
  $region19: #{sequential_forward.1} parent=0 // pred_check_branch
    %2052 = sbr.rel (0) target = $region21
  $region20: #{sequential_forward.1} parent=0 // pred_region
    _
  $region21: #{sequential_forward.1} parent=0 // pred_fallthru
    _

</llo_original>
